<compile_context>
chip_gen: v7x
topology: tpu7x:2x2x1
jax: 0.10.0
libtpu: 0.0.40
codegen_flags: <defaults>
</compile_context>

<pallas_src>
import math

import jax
import jax.numpy as jnp
from jax.experimental import pallas as pl
from jax.experimental.pallas import tpu as pltpu

_NEG = -1e30  # finite masking sentinel (Python literal -> no captured jnp constant)


# ----------------------------------------------------------------------------
# Fused attention kernel: ONE grid step, static loop over batch inside.
# Inputs arrive as (T, B*E) / (S, B*E): batch element b owns lanes [b*E:(b+1)*E].
# ----------------------------------------------------------------------------
def _make_attn_kernel(*, T, S, B, num_heads, head_dim, masked, dec_agent,
                      self_loop_add, mode):
    """mode: 'qkv' (query is key is value), 'kv' (key is value), 'none'."""
    E = num_heads * head_dim
    H = num_heads
    scale = 1.0 / math.sqrt(head_dim)

    def kernel(*refs):
        i = 0
        xq_ref = refs[i]; i += 1
        xkv_ref = xk_ref = xv_ref = None
        if mode == "kv":
            xkv_ref = refs[i]; i += 1
        elif mode == "none":
            xk_ref = refs[i]; i += 1
            xv_ref = refs[i]; i += 1
        if mode == "qkv":
            w_in_ref = refs[i]; i += 1          # (E, 3E) bf16  packed q|k|v
            b_in_ref = refs[i]; i += 1          # (1, 3E) f32
        elif mode == "kv":
            wq_ref = refs[i]; i += 1            # (E, E)  bf16
            bq_ref = refs[i]; i += 1            # (1, E)  f32
            wkv_ref = refs[i]; i += 1           # (E, 2E) bf16
            bkv_ref = refs[i]; i += 1           # (1, 2E) f32
        else:
            wq_ref = refs[i]; i += 1
            bq_ref = refs[i]; i += 1
            wk_ref = refs[i]; i += 1
            bk_ref = refs[i]; i += 1
            wv_ref = refs[i]; i += 1
            bv_ref = refs[i]; i += 1
        wo_ref = refs[i]; i += 1                # (E, E) bf16
        bo_ref = refs[i]; i += 1                # (1, E) f32
        am_ref = None
        if dec_agent:
            am_ref = refs[i]; i += 1            # (B, T, S) f32
        o_ref = refs[i]                         # (T, B*E)

        # ---- weights read once, hoisted out of the batch/head loops ----
        if mode == "qkv":
            w_in = w_in_ref[...]
            b_in = b_in_ref[...]
        elif mode == "kv":
            wq, bq = wq_ref[...], bq_ref[...]
            wkv, bkv = wkv_ref[...], bkv_ref[...]
        else:
            wq, bq = wq_ref[...], bq_ref[...]
            wk, bk = wk_ref[...], bk_ref[...]
            wv, bv = wv_ref[...], bv_ref[...]
        wo = wo_ref[...]
        bo = bo_ref[...]
        wo_h = [wo[h * head_dim:(h + 1) * head_dim, :] for h in range(H)]

        # ---- masks shared by every batch element / head, built once ----
        causal_bad = diag = None
        if masked or dec_agent:
            row = jax.lax.broadcasted_iota(jnp.int32, (T, S), 0)
            col = jax.lax.broadcasted_iota(jnp.int32, (T, S), 1)
            if masked:
                causal_bad = col > row          # tril(ones) == 0
            if dec_agent:
                diag = row == col

        for b in range(B):
            cq = slice(b * E, (b + 1) * E)      # this batch element's lane slab

            # ---- in-projection (bf16 MXU operands, f32 accumulation) ----
            xq_b = xq_ref[:, cq].astype(jnp.bfloat16)                 # (T, E)
            if mode == "qkv":
                qkv = jnp.dot(xq_b, w_in,
                              preferred_element_type=jnp.float32) + b_in
                q, k, v = qkv[:, :E], qkv[:, E:2 * E], qkv[:, 2 * E:]
            elif mode == "kv":
                xkv_b = xkv_ref[:, cq].astype(jnp.bfloat16)           # (S, E)
                q = jnp.dot(xq_b, wq, preferred_element_type=jnp.float32) + bq
                kv = jnp.dot(xkv_b, wkv, preferred_element_type=jnp.float32) + bkv
                k, v = kv[:, :E], kv[:, E:]
            else:
                xk_b = xk_ref[:, cq].astype(jnp.bfloat16)
                xv_b = xv_ref[:, cq].astype(jnp.bfloat16)
                q = jnp.dot(xq_b, wq, preferred_element_type=jnp.float32) + bq
                k = jnp.dot(xk_b, wk, preferred_element_type=jnp.float32) + bk
                v = jnp.dot(xv_b, wv, preferred_element_type=jnp.float32) + bv

            # ---- causal + agent masks combined ONCE -> one select per head ----
            am = None
            if dec_agent:
                am = am_ref[b]                                        # (T, S)
                if self_loop_add:
                    am = am + diag.astype(jnp.float32)
                else:
                    am = jnp.where(diag, 1.0, am)
                bad = am == 0.0
                if masked:
                    bad = jnp.logical_or(bad, causal_bad)
            else:
                bad = causal_bad                                      # may be None

            q16 = q.astype(jnp.bfloat16)
            k16 = k.astype(jnp.bfloat16)
            v16 = v.astype(jnp.bfloat16)

            # Per-head attention with the output projection folded per head
            # (out = sum_h ctx_h @ Wo[h*hd:(h+1)*hd, :]); no head-slab concat.
            acc = None
            for h in range(H):
                lo = h * head_dim
                s = jax.lax.dot_general(
                    q16[:, lo:lo + head_dim], k16[:, lo:lo + head_dim],
                    (((1,), (1,)), ((), ())),
                    preferred_element_type=jnp.float32) * scale       # (T, S)
                if bad is not None:
                    s = jnp.where(bad, _NEG, s)
                s = s - jnp.max(s, axis=-1, keepdims=True)
                e = jnp.exp(s)
                # one EUP reciprocal per row + VPU multiply (no full-tile divide)
                p = e * pl.reciprocal(jnp.sum(e, axis=-1, keepdims=True),
                                      approx=True)
                if am is not None:
                    p = p * am                  # un-normalized, matches PyTorch
                ctx = jnp.dot(p.astype(jnp.bfloat16), v16[:, lo:lo + head_dim],
                              preferred_element_type=jnp.float32)     # (T, hd)
                part = jnp.dot(ctx.astype(jnp.bfloat16), wo_h[h],
                               preferred_element_type=jnp.float32)    # (T, E)
                acc = part if acc is None else acc + part

            o_ref[:, cq] = (acc + bo).astype(o_ref.dtype)

    return kernel


# ----------------------------------------------------------------------------
# Wrapper: mirrors RelationMultiheadAttention.forward (relation=None path)
# ----------------------------------------------------------------------------
def relation_multihead_attention(query, key, value, params, relation=None,
                                 attn_mask=None, *, num_heads, masked=False,
                                 dec_agent=False, self_loop_add=True,
                                 need_weights=False):
    """query/key/value: (T, B, E) Time x Batch x Channel (PyTorch layout).
    attn_mask: (B, T, S) per-batch mask, broadcast across heads (decoder usage).
    Returns (attn (T, B, E), None)."""
    if relation is not None:
        # TODO(synk): relation != None branch (relation_in_proj per-pair q/k
        # offsets) is not implemented; this kernel covers the relation=None path.
        raise NotImplementedError("relation path not implemented")

    T, B, E = query.shape
    S = key.shape[0]
    assert key.shape == value.shape
    head_dim = E // num_heads
    assert head_dim * num_heads == E, "embed_dim must be divisible by num_heads"

    # Object-identity mode detection (mirrors the PyTorch data_ptr check).
    if (query is key) and (key is value):
        mode = "qkv"
    elif key is value:
        mode = "kv"
    else:
        mode = "none"

    f32, bf16 = jnp.float32, jnp.bfloat16
    w_in = params["in_proj_w"]                      # (E, 3E)
    b_in = params["in_proj_b"]                      # (3E,)

    # Time x Batch x Channel -> (T, B*E): contiguous merge of the trailing dims,
    # a FREE reshape (no transpose, no HBM copy). Batch lives in the lane dim.
    operands = [query.reshape(T, B * E)]
    in_specs = [pl.BlockSpec((T, B * E), lambda i: (0, 0))]
    if mode in ("kv", "none"):
        operands.append(key.reshape(S, B * E))
        in_specs.append(pl.BlockSpec((S, B * E), lambda i: (0, 0)))
    if mode == "none":
        operands.append(value.reshape(S, B * E))
        in_specs.append(pl.BlockSpec((S, B * E), lambda i: (0, 0)))

    # Weights pre-split per mode in the wrapper (no in-kernel column slicing of
    # packed weights before MXU pushes); MXU operands bf16, biases f32.
    if mode == "qkv":
        wbs = [(w_in.astype(bf16), (E, 3 * E)),
               (b_in.reshape(1, 3 * E).astype(f32), (1, 3 * E))]
    elif mode == "kv":
        wbs = [(w_in[:, :E].astype(bf16), (E, E)),
               (b_in[:E].reshape(1, E).astype(f32), (1, E)),
               (w_in[:, E:].astype(bf16), (E, 2 * E)),
               (b_in[E:].reshape(1, 2 * E).astype(f32), (1, 2 * E))]
    else:
        wbs = [(w_in[:, :E].astype(bf16), (E, E)),
               (b_in[:E].reshape(1, E).astype(f32), (1, E)),
               (w_in[:, E:2 * E].astype(bf16), (E, E)),
               (b_in[E:2 * E].reshape(1, E).astype(f32), (1, E)),
               (w_in[:, 2 * E:].astype(bf16), (E, E)),
               (b_in[2 * E:].reshape(1, E).astype(f32), (1, E))]
    wbs += [(params["out_proj_w"].astype(bf16), (E, E)),
            (params["out_proj_b"].reshape(1, E).astype(f32), (1, E))]
    for arr, shp in wbs:
        operands.append(arr)
        in_specs.append(pl.BlockSpec(shp, lambda i: (0, 0)))

    if dec_agent:
        if attn_mask is None:
            raise ValueError("dec_agent=True requires attn_mask of shape (B, T, S)")
        operands.append(attn_mask.astype(f32))
        in_specs.append(pl.BlockSpec((B, T, S), lambda i: (0, 0, 0)))
    # else: no mask operand at all -> no dead (B, T, S) DMA.

    kern = _make_attn_kernel(T=T, S=S, B=B, num_heads=num_heads,
                             head_dim=head_dim, masked=masked,
                             dec_agent=dec_agent, self_loop_add=self_loop_add,
                             mode=mode)

    # Single grid step: the whole forward (all batch elements) is one kernel
    # invocation -> no per-step pipeline overhead / per-step micro-DMAs.
    # TODO(synk): if n_agent grows past ~1-2k, raise vmem_limit_bytes (v7x has
    # only 64 MiB VMEM) or switch the score computation to a kv-tiled inner loop.
    out2d = pl.pallas_call(
        kern,
        out_shape=jax.ShapeDtypeStruct((T, B * E), query.dtype),
        grid=(1,),
        in_specs=in_specs,
        out_specs=pl.BlockSpec((T, B * E), lambda i: (0, 0)),
        compiler_params=pltpu.CompilerParams(dimension_semantics=("arbitrary",)),
    )(*operands)

    # (T, B*E) -> (T, B, E): free reshape back to Time x Batch x Channel.
    attn = out2d.reshape(T, B, E)
    # TODO(synk): need_weights=True (returning the attention maps) is not wired;
    # dropout is identity (p=0.0 / eval), matching the reference at inference.
    return attn, None


# ----------------------------------------------------------------------------
# Pure-JAX reference mirroring the PyTorch forward (for correctness checking)
# ----------------------------------------------------------------------------
def ref_relation_multihead_attention(query, key, value, params, attn_mask=None, *,
                                     num_heads, masked=False, dec_agent=False,
                                     self_loop_add=True):
    T, B, E = query.shape
    S = key.shape[0]
    H = num_heads
    hd = E // H
    w_in, b_in = params["in_proj_w"], params["in_proj_b"]
    q = query @ w_in[:, :E] + b_in[:E]
    k = key @ w_in[:, E:2 * E] + b_in[E:2 * E]
    v = value @ w_in[:, 2 * E:] + b_in[2 * E:]
    q = q.reshape(T, B * H, hd)
    k = k.reshape(S, B * H, hd)
    v = v.reshape(S, B * H, hd)
    aw = jnp.einsum("ibn,jbn->ijb", q, k) * (1.0 / math.sqrt(hd))
    if masked:
        causal = jnp.triu(jnp.ones((T, S), dtype=bool), k=1)
        aw = jnp.where(causal[:, :, None], -jnp.inf, aw)
    if dec_agent:
        am = jnp.transpose(attn_mask.astype(jnp.float32), (1, 2, 0))   # (T, S, B)
        eye = jnp.eye(T, S, dtype=jnp.float32)[:, :, None]
        am = am + eye if self_loop_add else am * (1.0 - eye) + eye
        am = jnp.repeat(am, H, axis=2)                                  # (T, S, B*H)
        aw = jnp.where(am == 0.0, -jnp.inf, aw)
        aw = jax.nn.softmax(aw, axis=1)
        aw = aw * am
    else:
        aw = jax.nn.softmax(aw, axis=1)
    attn = jnp.einsum("ijb,jbn->bin", aw, v)                            # (B*H, T, hd)
    attn = jnp.transpose(attn, (1, 0, 2)).reshape(T, B, E)
    return attn @ params["out_proj_w"] + params["out_proj_b"]


# ----------------------------------------------------------------------------
# Deterministic synthetic parameter init (shapes follow the PyTorch __init__)
# ----------------------------------------------------------------------------
def init_attention_params(key, embed_dim):
    """in_proj_w is the transposed PyTorch in_proj_weight, packed (E, 3E) so the
    kernel can produce q|k|v with a single MXU matmul. out_proj is a GPT-2 style
    Conv1D: y = x @ W + b with W of shape (E, E)."""
    # TODO(synk): relation_in_proj (Conv1D(2E, E)) params omitted (relation=None path).
    E = embed_dim
    k1, k2, k3, k4 = jax.random.split(key, 4)
    std = 1.0 / math.sqrt(E)
    return {
        "in_proj_w": jax.random.normal(k1, (E, 3 * E), jnp.float32) * std,
        "in_proj_b": jax.random.normal(k2, (3 * E,), jnp.float32) * 0.1,
        "out_proj_w": jax.random.normal(k3, (E, E), jnp.float32) * std,
        "out_proj_b": jax.random.normal(k4, (E,), jnp.float32) * 0.1,
    }


if __name__ == "__main__":
    n_agent, bsz, n_embd, n_head = 8, 2, 32, 4

    key = jax.random.PRNGKey(0)
    kx, kr, ky, km, kp = jax.random.split(key, 5)

    # Time x Batch x Channel inputs, as in the PyTorch module.
    x = jax.random.normal(kx, (n_agent, bsz, n_embd), jnp.float32)
    rep = jax.random.normal(kr, (n_agent, bsz, n_embd), jnp.float32)
    y = jax.random.normal(ky, (n_agent, bsz, n_embd), jnp.float32)
    attn_mask = (jax.random.uniform(km, (bsz, n_agent, n_agent)) < 0.6).astype(jnp.float32)
    params = init_attention_params(kp, n_embd)

    # bf16 MXU operands (per perf review) -> looser tolerance than the f32-only
    # version; still far below the O(0.3+) error any structural bug would cause.
    RTOL, ATOL = 5e-2, 5e-2

    # 1) self-attention (qkv_same): causal mask + dec_agent mask / self-loop add.
    out1, _ = relation_multihead_attention(
        x, x, x, params, None, attn_mask, num_heads=n_head, masked=True,
        dec_agent=True, self_loop_add=True)
    out1 = jax.block_until_ready(out1)
    ref1 = ref_relation_multihead_attention(
        x, x, x, params, attn_mask, num_heads=n_head, masked=True,
        dec_agent=True, self_loop_add=True)
    assert out1.shape == (n_agent, bsz, n_embd), out1.shape
    assert bool(jnp.all(jnp.isfinite(out1)))
    assert bool(jnp.allclose(out1, ref1, rtol=RTOL, atol=ATOL)), \
        float(jnp.max(jnp.abs(out1 - ref1)))

    # 2) cross-attention (kv_same): causal mask only, no attn_mask operand DMA'd.
    out2, _ = relation_multihead_attention(
        rep, x, x, params, num_heads=n_head, masked=True, dec_agent=False)
    out2 = jax.block_until_ready(out2)
    ref2 = ref_relation_multihead_attention(
        rep, x, x, params, num_heads=n_head, masked=True, dec_agent=False)
    assert out2.shape == (n_agent, bsz, n_embd), out2.shape
    assert bool(jnp.all(jnp.isfinite(out2)))
    assert bool(jnp.allclose(out2, ref2, rtol=RTOL, atol=ATOL)), \
        float(jnp.max(jnp.abs(out2 - ref2)))

    # 3) distinct q/k/v ('none' path): dec_agent mask with self_loop_add=False.
    out3, _ = relation_multihead_attention(
        rep, x, y, params, None, attn_mask, num_heads=n_head, masked=False,
        dec_agent=True, self_loop_add=False)
    out3 = jax.block_until_ready(out3)
    ref3 = ref_relation_multihead_attention(
        rep, x, y, params, attn_mask, num_heads=n_head, masked=False,
        dec_agent=True, self_loop_add=False)
    assert out3.shape == (n_agent, bsz, n_embd), out3.shape
    assert bool(jnp.all(jnp.isfinite(out3)))
    assert bool(jnp.allclose(out3, ref3, rtol=RTOL, atol=ATOL)), \
        float(jnp.max(jnp.abs(out3 - ref3)))

    print("KERNEL_OK")
</pallas_src>

<mosaic_0001>
module attributes {stable_mosaic.version = 11 : i64} {
  func.func @kernel(%arg0: i32, %arg1: memref<8x64xf32, #tpu.memory_space<vmem>>, %arg2: memref<32x96xbf16, #tpu.memory_space<vmem>>, %arg3: memref<1x96xf32, #tpu.memory_space<vmem>>, %arg4: memref<32x32xbf16, #tpu.memory_space<vmem>>, %arg5: memref<1x32xf32, #tpu.memory_space<vmem>>, %arg6: memref<2x8x8xf32, #tpu.memory_space<vmem>>, %arg7: memref<8x64xf32, #tpu.memory_space<vmem>>) attributes {dimension_semantics = [#tpu.dimension_semantics<arbitrary>], iteration_bounds = array<i64: 1>, scalar_prefetch = 0 : i64, scratch_operands = 0 : i64, tpu.core_type = #tpu.core_type<tc>, window_params = [{pipeline_mode = #tpu.pipeline_mode<synchronous>, transform_indices = @transform_0, window_bounds = array<i64: 8, 64>}, {pipeline_mode = #tpu.pipeline_mode<synchronous>, transform_indices = @transform_1, window_bounds = array<i64: 32, 96>}, {pipeline_mode = #tpu.pipeline_mode<synchronous>, transform_indices = @transform_2, window_bounds = array<i64: 1, 96>}, {pipeline_mode = #tpu.pipeline_mode<synchronous>, transform_indices = @transform_3, window_bounds = array<i64: 32, 32>}, {pipeline_mode = #tpu.pipeline_mode<synchronous>, transform_indices = @transform_4, window_bounds = array<i64: 1, 32>}, {pipeline_mode = #tpu.pipeline_mode<synchronous>, transform_indices = @transform_5, window_bounds = array<i64: 2, 8, 8>}, {pipeline_mode = #tpu.pipeline_mode<synchronous>, transform_indices = @transform_6, window_bounds = array<i64: 8, 64>}]} {
    %c0 = arith.constant 0 : index
    %c0_0 = arith.constant 0 : index
    %0 = vector.load %arg2[%c0, %c0_0] : memref<32x96xbf16, #tpu.memory_space<vmem>>, vector<32x96xbf16>
    %c0_1 = arith.constant 0 : index
    %c0_2 = arith.constant 0 : index
    %1 = vector.load %arg3[%c0_1, %c0_2] : memref<1x96xf32, #tpu.memory_space<vmem>>, vector<1x96xf32>
    %c0_3 = arith.constant 0 : index
    %c0_4 = arith.constant 0 : index
    %2 = vector.load %arg4[%c0_3, %c0_4] : memref<32x32xbf16, #tpu.memory_space<vmem>>, vector<32x32xbf16>
    %c0_5 = arith.constant 0 : index
    %c0_6 = arith.constant 0 : index
    %3 = vector.load %arg5[%c0_5, %c0_6] : memref<1x32xf32, #tpu.memory_space<vmem>>, vector<1x32xf32>
    %4 = vector.extract_strided_slice %2 {offsets = [0, 0], sizes = [8, 32], strides = [1, 1]} : vector<32x32xbf16> to vector<8x32xbf16>
    %5 = vector.extract_strided_slice %2 {offsets = [8, 0], sizes = [8, 32], strides = [1, 1]} : vector<32x32xbf16> to vector<8x32xbf16>
    %6 = vector.extract_strided_slice %2 {offsets = [16, 0], sizes = [8, 32], strides = [1, 1]} : vector<32x32xbf16> to vector<8x32xbf16>
    %7 = vector.extract_strided_slice %2 {offsets = [24, 0], sizes = [8, 32], strides = [1, 1]} : vector<32x32xbf16> to vector<8x32xbf16>
    %8 = tpu.iota {dimensions = array<i32: 0>} : vector<8x8xi32>
    %9 = tpu.iota {dimensions = array<i32: 1>} : vector<8x8xi32>
    %10 = arith.cmpi sgt, %9, %8 : vector<8x8xi32>
    %11 = arith.cmpi eq, %8, %9 : vector<8x8xi32>
    %c0_7 = arith.constant 0 : index
    %c0_8 = arith.constant 0 : index
    %12 = vector.load %arg1[%c0_7, %c0_8] : memref<8x64xf32, #tpu.memory_space<vmem>>, vector<8x32xf32>
    %13 = arith.truncf %12 : vector<8x32xf32> to vector<8x32xbf16>
    %cst = arith.constant dense<0.000000e+00> : vector<8x96xf32>
    %14 = tpu.matmul %13, %0, %cst {dimension_numbers = #tpu.dot_dimension_numbers<[1], [0], [0], [1], [0, 0, 1, 1], [], []>} : vector<8x32xbf16>, vector<32x96xbf16>, vector<8x96xf32> -> vector<8x96xf32>
    %15 = vector.broadcast %1 : vector<1x96xf32> to vector<8x96xf32>
    %16 = arith.addf %14, %15 : vector<8x96xf32>
    %17 = vector.extract_strided_slice %16 {offsets = [0, 0], sizes = [8, 32], strides = [1, 1]} : vector<8x96xf32> to vector<8x32xf32>
    %18 = vector.extract_strided_slice %16 {offsets = [0, 32], sizes = [8, 32], strides = [1, 1]} : vector<8x96xf32> to vector<8x32xf32>
    %19 = vector.extract_strided_slice %16 {offsets = [0, 64], sizes = [8, 32], strides = [1, 1]} : vector<8x96xf32> to vector<8x32xf32>
    %c0_9 = arith.constant 0 : index
    %c0_10 = arith.constant 0 : index
    %c0_11 = arith.constant 0 : index
    %20 = vector.load %arg6[%c0_9, %c0_10, %c0_11] : memref<2x8x8xf32, #tpu.memory_space<vmem>>, vector<1x8x8xf32>
    %21 = vector.shape_cast %20 : vector<1x8x8xf32> to vector<8x8xf32>
    %22 = arith.extui %11 : vector<8x8xi1> to vector<8x8xi32>
    %23 = arith.sitofp %22 : vector<8x8xi32> to vector<8x8xf32>
    %24 = arith.addf %21, %23 : vector<8x8xf32>
    %cst_12 = arith.constant 0.000000e+00 : f32
    %25 = vector.broadcast %cst_12 : f32 to vector<8x8xf32>
    %26 = arith.cmpf oeq, %24, %25 : vector<8x8xf32>
    %27 = arith.ori %26, %10 : vector<8x8xi1>
    %28 = arith.truncf %17 : vector<8x32xf32> to vector<8x32xbf16>
    %29 = arith.truncf %18 : vector<8x32xf32> to vector<8x32xbf16>
    %30 = arith.truncf %19 : vector<8x32xf32> to vector<8x32xbf16>
    %31 = vector.extract_strided_slice %28 {offsets = [0, 0], sizes = [8, 8], strides = [1, 1]} : vector<8x32xbf16> to vector<8x8xbf16>
    %32 = vector.extract_strided_slice %29 {offsets = [0, 0], sizes = [8, 8], strides = [1, 1]} : vector<8x32xbf16> to vector<8x8xbf16>
    %cst_13 = arith.constant dense<0.000000e+00> : vector<8x8xf32>
    %33 = tpu.matmul %31, %32, %cst_13 {dimension_numbers = #tpu.dot_dimension_numbers<[1], [1], [0], [0], [0, 0, 1, 0], [], []>} : vector<8x8xbf16>, vector<8x8xbf16>, vector<8x8xf32> -> vector<8x8xf32>
    %cst_14 = arith.constant 0.353553385 : f32
    %34 = vector.broadcast %cst_14 : f32 to vector<8x8xf32>
    %35 = arith.mulf %33, %34 : vector<8x8xf32>
    %cst_15 = arith.constant -1.000000e+30 : f32
    %36 = vector.broadcast %cst_15 : f32 to vector<8x8xf32>
    %37 = arith.select %27, %36, %35 : vector<8x8xi1>, vector<8x8xf32>
    %cst_16 = arith.constant dense<0xFF800000> : vector<8xf32>
    %38 = vector.multi_reduction <maximumf>, %37, %cst_16 [1] : vector<8x8xf32> to vector<8xf32>
    %39 = vector.shape_cast %38 : vector<8xf32> to vector<8x1xf32>
    %40 = vector.broadcast %39 : vector<8x1xf32> to vector<8x8xf32>
    %41 = arith.subf %37, %40 : vector<8x8xf32>
    %42 = math.exp %41 : vector<8x8xf32>
    %cst_17 = arith.constant dense<0.000000e+00> : vector<8xf32>
    %43 = vector.multi_reduction <add>, %42, %cst_17 [1] : vector<8x8xf32> to vector<8xf32>
    %44 = vector.shape_cast %43 : vector<8xf32> to vector<8x1xf32>
    %45 = tpu.reciprocal %44 {approx = true} : vector<8x1xf32> -> vector<8x1xf32>
    %46 = vector.broadcast %45 : vector<8x1xf32> to vector<8x8xf32>
    %47 = arith.mulf %42, %46 : vector<8x8xf32>
    %48 = arith.mulf %47, %24 : vector<8x8xf32>
    %49 = arith.truncf %48 : vector<8x8xf32> to vector<8x8xbf16>
    %50 = vector.extract_strided_slice %30 {offsets = [0, 0], sizes = [8, 8], strides = [1, 1]} : vector<8x32xbf16> to vector<8x8xbf16>
    %cst_18 = arith.constant dense<0.000000e+00> : vector<8x8xf32>
    %51 = tpu.matmul %49, %50, %cst_18 {dimension_numbers = #tpu.dot_dimension_numbers<[1], [0], [0], [1], [0, 0, 1, 1], [], []>} : vector<8x8xbf16>, vector<8x8xbf16>, vector<8x8xf32> -> vector<8x8xf32>
    %52 = arith.truncf %51 : vector<8x8xf32> to vector<8x8xbf16>
    %cst_19 = arith.constant dense<0.000000e+00> : vector<8x32xf32>
    %53 = tpu.matmul %52, %4, %cst_19 {dimension_numbers = #tpu.dot_dimension_numbers<[1], [0], [0], [1], [0, 0, 1, 1], [], []>} : vector<8x8xbf16>, vector<8x32xbf16>, vector<8x32xf32> -> vector<8x32xf32>
    %54 = vector.extract_strided_slice %28 {offsets = [0, 8], sizes = [8, 8], strides = [1, 1]} : vector<8x32xbf16> to vector<8x8xbf16>
    %55 = vector.extract_strided_slice %29 {offsets = [0, 8], sizes = [8, 8], strides = [1, 1]} : vector<8x32xbf16> to vector<8x8xbf16>
    %cst_20 = arith.constant dense<0.000000e+00> : vector<8x8xf32>
    %56 = tpu.matmul %54, %55, %cst_20 {dimension_numbers = #tpu.dot_dimension_numbers<[1], [1], [0], [0], [0, 0, 1, 0], [], []>} : vector<8x8xbf16>, vector<8x8xbf16>, vector<8x8xf32> -> vector<8x8xf32>
    %cst_21 = arith.constant 0.353553385 : f32
    %57 = vector.broadcast %cst_21 : f32 to vector<8x8xf32>
    %58 = arith.mulf %56, %57 : vector<8x8xf32>
    %cst_22 = arith.constant -1.000000e+30 : f32
    %59 = vector.broadcast %cst_22 : f32 to vector<8x8xf32>
    %60 = arith.select %27, %59, %58 : vector<8x8xi1>, vector<8x8xf32>
    %cst_23 = arith.constant dense<0xFF800000> : vector<8xf32>
    %61 = vector.multi_reduction <maximumf>, %60, %cst_23 [1] : vector<8x8xf32> to vector<8xf32>
    %62 = vector.shape_cast %61 : vector<8xf32> to vector<8x1xf32>
    %63 = vector.broadcast %62 : vector<8x1xf32> to vector<8x8xf32>
    %64 = arith.subf %60, %63 : vector<8x8xf32>
    %65 = math.exp %64 : vector<8x8xf32>
    %cst_24 = arith.constant dense<0.000000e+00> : vector<8xf32>
    %66 = vector.multi_reduction <add>, %65, %cst_24 [1] : vector<8x8xf32> to vector<8xf32>
    %67 = vector.shape_cast %66 : vector<8xf32> to vector<8x1xf32>
    %68 = tpu.reciprocal %67 {approx = true} : vector<8x1xf32> -> vector<8x1xf32>
    %69 = vector.broadcast %68 : vector<8x1xf32> to vector<8x8xf32>
    %70 = arith.mulf %65, %69 : vector<8x8xf32>
    %71 = arith.mulf %70, %24 : vector<8x8xf32>
    %72 = arith.truncf %71 : vector<8x8xf32> to vector<8x8xbf16>
    %73 = vector.extract_strided_slice %30 {offsets = [0, 8], sizes = [8, 8], strides = [1, 1]} : vector<8x32xbf16> to vector<8x8xbf16>
    %cst_25 = arith.constant dense<0.000000e+00> : vector<8x8xf32>
    %74 = tpu.matmul %72, %73, %cst_25 {dimension_numbers = #tpu.dot_dimension_numbers<[1], [0], [0], [1], [0, 0, 1, 1], [], []>} : vector<8x8xbf16>, vector<8x8xbf16>, vector<8x8xf32> -> vector<8x8xf32>
    %75 = arith.truncf %74 : vector<8x8xf32> to vector<8x8xbf16>
    %cst_26 = arith.constant dense<0.000000e+00> : vector<8x32xf32>
    %76 = tpu.matmul %75, %5, %cst_26 {dimension_numbers = #tpu.dot_dimension_numbers<[1], [0], [0], [1], [0, 0, 1, 1], [], []>} : vector<8x8xbf16>, vector<8x32xbf16>, vector<8x32xf32> -> vector<8x32xf32>
    %77 = arith.addf %53, %76 : vector<8x32xf32>
    %78 = vector.extract_strided_slice %28 {offsets = [0, 16], sizes = [8, 8], strides = [1, 1]} : vector<8x32xbf16> to vector<8x8xbf16>
    %79 = vector.extract_strided_slice %29 {offsets = [0, 16], sizes = [8, 8], strides = [1, 1]} : vector<8x32xbf16> to vector<8x8xbf16>
    %cst_27 = arith.constant dense<0.000000e+00> : vector<8x8xf32>
    %80 = tpu.matmul %78, %79, %cst_27 {dimension_numbers = #tpu.dot_dimension_numbers<[1], [1], [0], [0], [0, 0, 1, 0], [], []>} : vector<8x8xbf16>, vector<8x8xbf16>, vector<8x8xf32> -> vector<8x8xf32>
    %cst_28 = arith.constant 0.353553385 : f32
    %81 = vector.broadcast %cst_28 : f32 to vector<8x8xf32>
    %82 = arith.mulf %80, %81 : vector<8x8xf32>
    %cst_29 = arith.constant -1.000000e+30 : f32
    %83 = vector.broadcast %cst_29 : f32 to vector<8x8xf32>
    %84 = arith.select %27, %83, %82 : vector<8x8xi1>, vector<8x8xf32>
    %cst_30 = arith.constant dense<0xFF800000> : vector<8xf32>
    %85 = vector.multi_reduction <maximumf>, %84, %cst_30 [1] : vector<8x8xf32> to vector<8xf32>
    %86 = vector.shape_cast %85 : vector<8xf32> to vector<8x1xf32>
    %87 = vector.broadcast %86 : vector<8x1xf32> to vector<8x8xf32>
    %88 = arith.subf %84, %87 : vector<8x8xf32>
    %89 = math.exp %88 : vector<8x8xf32>
    %cst_31 = arith.constant dense<0.000000e+00> : vector<8xf32>
    %90 = vector.multi_reduction <add>, %89, %cst_31 [1] : vector<8x8xf32> to vector<8xf32>
    %91 = vector.shape_cast %90 : vector<8xf32> to vector<8x1xf32>
    %92 = tpu.reciprocal %91 {approx = true} : vector<8x1xf32> -> vector<8x1xf32>
    %93 = vector.broadcast %92 : vector<8x1xf32> to vector<8x8xf32>
    %94 = arith.mulf %89, %93 : vector<8x8xf32>
    %95 = arith.mulf %94, %24 : vector<8x8xf32>
    %96 = arith.truncf %95 : vector<8x8xf32> to vector<8x8xbf16>
    %97 = vector.extract_strided_slice %30 {offsets = [0, 16], sizes = [8, 8], strides = [1, 1]} : vector<8x32xbf16> to vector<8x8xbf16>
    %cst_32 = arith.constant dense<0.000000e+00> : vector<8x8xf32>
    %98 = tpu.matmul %96, %97, %cst_32 {dimension_numbers = #tpu.dot_dimension_numbers<[1], [0], [0], [1], [0, 0, 1, 1], [], []>} : vector<8x8xbf16>, vector<8x8xbf16>, vector<8x8xf32> -> vector<8x8xf32>
    %99 = arith.truncf %98 : vector<8x8xf32> to vector<8x8xbf16>
    %cst_33 = arith.constant dense<0.000000e+00> : vector<8x32xf32>
    %100 = tpu.matmul %99, %6, %cst_33 {dimension_numbers = #tpu.dot_dimension_numbers<[1], [0], [0], [1], [0, 0, 1, 1], [], []>} : vector<8x8xbf16>, vector<8x32xbf16>, vector<8x32xf32> -> vector<8x32xf32>
    %101 = arith.addf %77, %100 : vector<8x32xf32>
    %102 = vector.extract_strided_slice %28 {offsets = [0, 24], sizes = [8, 8], strides = [1, 1]} : vector<8x32xbf16> to vector<8x8xbf16>
    %103 = vector.extract_strided_slice %29 {offsets = [0, 24], sizes = [8, 8], strides = [1, 1]} : vector<8x32xbf16> to vector<8x8xbf16>
    %cst_34 = arith.constant dense<0.000000e+00> : vector<8x8xf32>
    %104 = tpu.matmul %102, %103, %cst_34 {dimension_numbers = #tpu.dot_dimension_numbers<[1], [1], [0], [0], [0, 0, 1, 0], [], []>} : vector<8x8xbf16>, vector<8x8xbf16>, vector<8x8xf32> -> vector<8x8xf32>
    %cst_35 = arith.constant 0.353553385 : f32
    %105 = vector.broadcast %cst_35 : f32 to vector<8x8xf32>
    %106 = arith.mulf %104, %105 : vector<8x8xf32>
    %cst_36 = arith.constant -1.000000e+30 : f32
    %107 = vector.broadcast %cst_36 : f32 to vector<8x8xf32>
    %108 = arith.select %27, %107, %106 : vector<8x8xi1>, vector<8x8xf32>
    %cst_37 = arith.constant dense<0xFF800000> : vector<8xf32>
    %109 = vector.multi_reduction <maximumf>, %108, %cst_37 [1] : vector<8x8xf32> to vector<8xf32>
    %110 = vector.shape_cast %109 : vector<8xf32> to vector<8x1xf32>
    %111 = vector.broadcast %110 : vector<8x1xf32> to vector<8x8xf32>
    %112 = arith.subf %108, %111 : vector<8x8xf32>
    %113 = math.exp %112 : vector<8x8xf32>
    %cst_38 = arith.constant dense<0.000000e+00> : vector<8xf32>
    %114 = vector.multi_reduction <add>, %113, %cst_38 [1] : vector<8x8xf32> to vector<8xf32>
    %115 = vector.shape_cast %114 : vector<8xf32> to vector<8x1xf32>
    %116 = tpu.reciprocal %115 {approx = true} : vector<8x1xf32> -> vector<8x1xf32>
    %117 = vector.broadcast %116 : vector<8x1xf32> to vector<8x8xf32>
    %118 = arith.mulf %113, %117 : vector<8x8xf32>
    %119 = arith.mulf %118, %24 : vector<8x8xf32>
    %120 = arith.truncf %119 : vector<8x8xf32> to vector<8x8xbf16>
    %121 = vector.extract_strided_slice %30 {offsets = [0, 24], sizes = [8, 8], strides = [1, 1]} : vector<8x32xbf16> to vector<8x8xbf16>
    %cst_39 = arith.constant dense<0.000000e+00> : vector<8x8xf32>
    %122 = tpu.matmul %120, %121, %cst_39 {dimension_numbers = #tpu.dot_dimension_numbers<[1], [0], [0], [1], [0, 0, 1, 1], [], []>} : vector<8x8xbf16>, vector<8x8xbf16>, vector<8x8xf32> -> vector<8x8xf32>
    %123 = arith.truncf %122 : vector<8x8xf32> to vector<8x8xbf16>
    %cst_40 = arith.constant dense<0.000000e+00> : vector<8x32xf32>
    %124 = tpu.matmul %123, %7, %cst_40 {dimension_numbers = #tpu.dot_dimension_numbers<[1], [0], [0], [1], [0, 0, 1, 1], [], []>} : vector<8x8xbf16>, vector<8x32xbf16>, vector<8x32xf32> -> vector<8x32xf32>
    %125 = arith.addf %101, %124 : vector<8x32xf32>
    %126 = vector.broadcast %3 : vector<1x32xf32> to vector<8x32xf32>
    %127 = arith.addf %125, %126 : vector<8x32xf32>
    %c0_41 = arith.constant 0 : index
    %c0_42 = arith.constant 0 : index
    %128 = vector.load %arg7[%c0_41, %c0_42] : memref<8x64xf32, #tpu.memory_space<vmem>>, vector<8x32xf32>
    tpu.vector_store %arg7[%c0_41, %c0_42], %127 {strides = array<i32>} : memref<8x64xf32, #tpu.memory_space<vmem>>, vector<8x32xf32>,
    %c0_43 = arith.constant 0 : index
    %c32 = arith.constant 32 : index
    %129 = vector.load %arg1[%c0_43, %c32] : memref<8x64xf32, #tpu.memory_space<vmem>>, vector<8x32xf32>
    %130 = arith.truncf %129 : vector<8x32xf32> to vector<8x32xbf16>
    %cst_44 = arith.constant dense<0.000000e+00> : vector<8x96xf32>
    %131 = tpu.matmul %130, %0, %cst_44 {dimension_numbers = #tpu.dot_dimension_numbers<[1], [0], [0], [1], [0, 0, 1, 1], [], []>} : vector<8x32xbf16>, vector<32x96xbf16>, vector<8x96xf32> -> vector<8x96xf32>
    %132 = vector.broadcast %1 : vector<1x96xf32> to vector<8x96xf32>
    %133 = arith.addf %131, %132 : vector<8x96xf32>
    %134 = vector.extract_strided_slice %133 {offsets = [0, 0], sizes = [8, 32], strides = [1, 1]} : vector<8x96xf32> to vector<8x32xf32>
    %135 = vector.extract_strided_slice %133 {offsets = [0, 32], sizes = [8, 32], strides = [1, 1]} : vector<8x96xf32> to vector<8x32xf32>
    %136 = vector.extract_strided_slice %133 {offsets = [0, 64], sizes = [8, 32], strides = [1, 1]} : vector<8x96xf32> to vector<8x32xf32>
    %c1 = arith.constant 1 : index
    %c0_45 = arith.constant 0 : index
    %c0_46 = arith.constant 0 : index
    %137 = vector.load %arg6[%c1, %c0_45, %c0_46] : memref<2x8x8xf32, #tpu.memory_space<vmem>>, vector<1x8x8xf32>
    %138 = vector.shape_cast %137 : vector<1x8x8xf32> to vector<8x8xf32>
    %139 = arith.extui %11 : vector<8x8xi1> to vector<8x8xi32>
    %140 = arith.sitofp %139 : vector<8x8xi32> to vector<8x8xf32>
    %141 = arith.addf %138, %140 : vector<8x8xf32>
    %cst_47 = arith.constant 0.000000e+00 : f32
    %142 = vector.broadcast %cst_47 : f32 to vector<8x8xf32>
    %143 = arith.cmpf oeq, %141, %142 : vector<8x8xf32>
    %144 = arith.ori %143, %10 : vector<8x8xi1>
    %145 = arith.truncf %134 : vector<8x32xf32> to vector<8x32xbf16>
    %146 = arith.truncf %135 : vector<8x32xf32> to vector<8x32xbf16>
    %147 = arith.truncf %136 : vector<8x32xf32> to vector<8x32xbf16>
    %148 = vector.extract_strided_slice %145 {offsets = [0, 0], sizes = [8, 8], strides = [1, 1]} : vector<8x32xbf16> to vector<8x8xbf16>
    %149 = vector.extract_strided_slice %146 {offsets = [0, 0], sizes = [8, 8], strides = [1, 1]} : vector<8x32xbf16> to vector<8x8xbf16>
    %cst_48 = arith.constant dense<0.000000e+00> : vector<8x8xf32>
    %150 = tpu.matmul %148, %149, %cst_48 {dimension_numbers = #tpu.dot_dimension_numbers<[1], [1], [0], [0], [0, 0, 1, 0], [], []>} : vector<8x8xbf16>, vector<8x8xbf16>, vector<8x8xf32> -> vector<8x8xf32>
    %cst_49 = arith.constant 0.353553385 : f32
    %151 = vector.broadcast %cst_49 : f32 to vector<8x8xf32>
    %152 = arith.mulf %150, %151 : vector<8x8xf32>
    %cst_50 = arith.constant -1.000000e+30 : f32
    %153 = vector.broadcast %cst_50 : f32 to vector<8x8xf32>
    %154 = arith.select %144, %153, %152 : vector<8x8xi1>, vector<8x8xf32>
    %cst_51 = arith.constant dense<0xFF800000> : vector<8xf32>
    %155 = vector.multi_reduction <maximumf>, %154, %cst_51 [1] : vector<8x8xf32> to vector<8xf32>
    %156 = vector.shape_cast %155 : vector<8xf32> to vector<8x1xf32>
    %157 = vector.broadcast %156 : vector<8x1xf32> to vector<8x8xf32>
    %158 = arith.subf %154, %157 : vector<8x8xf32>
    %159 = math.exp %158 : vector<8x8xf32>
    %cst_52 = arith.constant dense<0.000000e+00> : vector<8xf32>
    %160 = vector.multi_reduction <add>, %159, %cst_52 [1] : vector<8x8xf32> to vector<8xf32>
    %161 = vector.shape_cast %160 : vector<8xf32> to vector<8x1xf32>
    %162 = tpu.reciprocal %161 {approx = true} : vector<8x1xf32> -> vector<8x1xf32>
    %163 = vector.broadcast %162 : vector<8x1xf32> to vector<8x8xf32>
    %164 = arith.mulf %159, %163 : vector<8x8xf32>
    %165 = arith.mulf %164, %141 : vector<8x8xf32>
    %166 = arith.truncf %165 : vector<8x8xf32> to vector<8x8xbf16>
    %167 = vector.extract_strided_slice %147 {offsets = [0, 0], sizes = [8, 8], strides = [1, 1]} : vector<8x32xbf16> to vector<8x8xbf16>
    %cst_53 = arith.constant dense<0.000000e+00> : vector<8x8xf32>
    %168 = tpu.matmul %166, %167, %cst_53 {dimension_numbers = #tpu.dot_dimension_numbers<[1], [0], [0], [1], [0, 0, 1, 1], [], []>} : vector<8x8xbf16>, vector<8x8xbf16>, vector<8x8xf32> -> vector<8x8xf32>
    %169 = arith.truncf %168 : vector<8x8xf32> to vector<8x8xbf16>
    %cst_54 = arith.constant dense<0.000000e+00> : vector<8x32xf32>
    %170 = tpu.matmul %169, %4, %cst_54 {dimension_numbers = #tpu.dot_dimension_numbers<[1], [0], [0], [1], [0, 0, 1, 1], [], []>} : vector<8x8xbf16>, vector<8x32xbf16>, vector<8x32xf32> -> vector<8x32xf32>
    %171 = vector.extract_strided_slice %145 {offsets = [0, 8], sizes = [8, 8], strides = [1, 1]} : vector<8x32xbf16> to vector<8x8xbf16>
    %172 = vector.extract_strided_slice %146 {offsets = [0, 8], sizes = [8, 8], strides = [1, 1]} : vector<8x32xbf16> to vector<8x8xbf16>
    %cst_55 = arith.constant dense<0.000000e+00> : vector<8x8xf32>
    %173 = tpu.matmul %171, %172, %cst_55 {dimension_numbers = #tpu.dot_dimension_numbers<[1], [1], [0], [0], [0, 0, 1, 0], [], []>} : vector<8x8xbf16>, vector<8x8xbf16>, vector<8x8xf32> -> vector<8x8xf32>
    %cst_56 = arith.constant 0.353553385 : f32
    %174 = vector.broadcast %cst_56 : f32 to vector<8x8xf32>
    %175 = arith.mulf %173, %174 : vector<8x8xf32>
    %cst_57 = arith.constant -1.000000e+30 : f32
    %176 = vector.broadcast %cst_57 : f32 to vector<8x8xf32>
    %177 = arith.select %144, %176, %175 : vector<8x8xi1>, vector<8x8xf32>
    %cst_58 = arith.constant dense<0xFF800000> : vector<8xf32>
    %178 = vector.multi_reduction <maximumf>, %177, %cst_58 [1] : vector<8x8xf32> to vector<8xf32>
    %179 = vector.shape_cast %178 : vector<8xf32> to vector<8x1xf32>
    %180 = vector.broadcast %179 : vector<8x1xf32> to vector<8x8xf32>
    %181 = arith.subf %177, %180 : vector<8x8xf32>
    %182 = math.exp %181 : vector<8x8xf32>
    %cst_59 = arith.constant dense<0.000000e+00> : vector<8xf32>
    %183 = vector.multi_reduction <add>, %182, %cst_59 [1] : vector<8x8xf32> to vector<8xf32>
    %184 = vector.shape_cast %183 : vector<8xf32> to vector<8x1xf32>
    %185 = tpu.reciprocal %184 {approx = true} : vector<8x1xf32> -> vector<8x1xf32>
    %186 = vector.broadcast %185 : vector<8x1xf32> to vector<8x8xf32>
    %187 = arith.mulf %182, %186 : vector<8x8xf32>
    %188 = arith.mulf %187, %141 : vector<8x8xf32>
    %189 = arith.truncf %188 : vector<8x8xf32> to vector<8x8xbf16>
    %190 = vector.extract_strided_slice %147 {offsets = [0, 8], sizes = [8, 8], strides = [1, 1]} : vector<8x32xbf16> to vector<8x8xbf16>
    %cst_60 = arith.constant dense<0.000000e+00> : vector<8x8xf32>
    %191 = tpu.matmul %189, %190, %cst_60 {dimension_numbers = #tpu.dot_dimension_numbers<[1], [0], [0], [1], [0, 0, 1, 1], [], []>} : vector<8x8xbf16>, vector<8x8xbf16>, vector<8x8xf32> -> vector<8x8xf32>
    %192 = arith.truncf %191 : vector<8x8xf32> to vector<8x8xbf16>
    %cst_61 = arith.constant dense<0.000000e+00> : vector<8x32xf32>
    %193 = tpu.matmul %192, %5, %cst_61 {dimension_numbers = #tpu.dot_dimension_numbers<[1], [0], [0], [1], [0, 0, 1, 1], [], []>} : vector<8x8xbf16>, vector<8x32xbf16>, vector<8x32xf32> -> vector<8x32xf32>
    %194 = arith.addf %170, %193 : vector<8x32xf32>
    %195 = vector.extract_strided_slice %145 {offsets = [0, 16], sizes = [8, 8], strides = [1, 1]} : vector<8x32xbf16> to vector<8x8xbf16>
    %196 = vector.extract_strided_slice %146 {offsets = [0, 16], sizes = [8, 8], strides = [1, 1]} : vector<8x32xbf16> to vector<8x8xbf16>
    %cst_62 = arith.constant dense<0.000000e+00> : vector<8x8xf32>
    %197 = tpu.matmul %195, %196, %cst_62 {dimension_numbers = #tpu.dot_dimension_numbers<[1], [1], [0], [0], [0, 0, 1, 0], [], []>} : vector<8x8xbf16>, vector<8x8xbf16>, vector<8x8xf32> -> vector<8x8xf32>
    %cst_63 = arith.constant 0.353553385 : f32
    %198 = vector.broadcast %cst_63 : f32 to vector<8x8xf32>
    %199 = arith.mulf %197, %198 : vector<8x8xf32>
    %cst_64 = arith.constant -1.000000e+30 : f32
    %200 = vector.broadcast %cst_64 : f32 to vector<8x8xf32>
    %201 = arith.select %144, %200, %199 : vector<8x8xi1>, vector<8x8xf32>
    %cst_65 = arith.constant dense<0xFF800000> : vector<8xf32>
    %202 = vector.multi_reduction <maximumf>, %201, %cst_65 [1] : vector<8x8xf32> to vector<8xf32>
    %203 = vector.shape_cast %202 : vector<8xf32> to vector<8x1xf32>
    %204 = vector.broadcast %203 : vector<8x1xf32> to vector<8x8xf32>
    %205 = arith.subf %201, %204 : vector<8x8xf32>
    %206 = math.exp %205 : vector<8x8xf32>
    %cst_66 = arith.constant dense<0.000000e+00> : vector<8xf32>
    %207 = vector.multi_reduction <add>, %206, %cst_66 [1] : vector<8x8xf32> to vector<8xf32>
    %208 = vector.shape_cast %207 : vector<8xf32> to vector<8x1xf32>
    %209 = tpu.reciprocal %208 {approx = true} : vector<8x1xf32> -> vector<8x1xf32>
    %210 = vector.broadcast %209 : vector<8x1xf32> to vector<8x8xf32>
    %211 = arith.mulf %206, %210 : vector<8x8xf32>
    %212 = arith.mulf %211, %141 : vector<8x8xf32>
    %213 = arith.truncf %212 : vector<8x8xf32> to vector<8x8xbf16>
    %214 = vector.extract_strided_slice %147 {offsets = [0, 16], sizes = [8, 8], strides = [1, 1]} : vector<8x32xbf16> to vector<8x8xbf16>
    %cst_67 = arith.constant dense<0.000000e+00> : vector<8x8xf32>
    %215 = tpu.matmul %213, %214, %cst_67 {dimension_numbers = #tpu.dot_dimension_numbers<[1], [0], [0], [1], [0, 0, 1, 1], [], []>} : vector<8x8xbf16>, vector<8x8xbf16>, vector<8x8xf32> -> vector<8x8xf32>
    %216 = arith.truncf %215 : vector<8x8xf32> to vector<8x8xbf16>
    %cst_68 = arith.constant dense<0.000000e+00> : vector<8x32xf32>
    %217 = tpu.matmul %216, %6, %cst_68 {dimension_numbers = #tpu.dot_dimension_numbers<[1], [0], [0], [1], [0, 0, 1, 1], [], []>} : vector<8x8xbf16>, vector<8x32xbf16>, vector<8x32xf32> -> vector<8x32xf32>
    %218 = arith.addf %194, %217 : vector<8x32xf32>
    %219 = vector.extract_strided_slice %145 {offsets = [0, 24], sizes = [8, 8], strides = [1, 1]} : vector<8x32xbf16> to vector<8x8xbf16>
    %220 = vector.extract_strided_slice %146 {offsets = [0, 24], sizes = [8, 8], strides = [1, 1]} : vector<8x32xbf16> to vector<8x8xbf16>
    %cst_69 = arith.constant dense<0.000000e+00> : vector<8x8xf32>
    %221 = tpu.matmul %219, %220, %cst_69 {dimension_numbers = #tpu.dot_dimension_numbers<[1], [1], [0], [0], [0, 0, 1, 0], [], []>} : vector<8x8xbf16>, vector<8x8xbf16>, vector<8x8xf32> -> vector<8x8xf32>
    %cst_70 = arith.constant 0.353553385 : f32
    %222 = vector.broadcast %cst_70 : f32 to vector<8x8xf32>
    %223 = arith.mulf %221, %222 : vector<8x8xf32>
    %cst_71 = arith.constant -1.000000e+30 : f32
    %224 = vector.broadcast %cst_71 : f32 to vector<8x8xf32>
    %225 = arith.select %144, %224, %223 : vector<8x8xi1>, vector<8x8xf32>
    %cst_72 = arith.constant dense<0xFF800000> : vector<8xf32>
    %226 = vector.multi_reduction <maximumf>, %225, %cst_72 [1] : vector<8x8xf32> to vector<8xf32>
    %227 = vector.shape_cast %226 : vector<8xf32> to vector<8x1xf32>
    %228 = vector.broadcast %227 : vector<8x1xf32> to vector<8x8xf32>
    %229 = arith.subf %225, %228 : vector<8x8xf32>
    %230 = math.exp %229 : vector<8x8xf32>
    %cst_73 = arith.constant dense<0.000000e+00> : vector<8xf32>
    %231 = vector.multi_reduction <add>, %230, %cst_73 [1] : vector<8x8xf32> to vector<8xf32>
    %232 = vector.shape_cast %231 : vector<8xf32> to vector<8x1xf32>
    %233 = tpu.reciprocal %232 {approx = true} : vector<8x1xf32> -> vector<8x1xf32>
    %234 = vector.broadcast %233 : vector<8x1xf32> to vector<8x8xf32>
    %235 = arith.mulf %230, %234 : vector<8x8xf32>
    %236 = arith.mulf %235, %141 : vector<8x8xf32>
    %237 = arith.truncf %236 : vector<8x8xf32> to vector<8x8xbf16>
    %238 = vector.extract_strided_slice %147 {offsets = [0, 24], sizes = [8, 8], strides = [1, 1]} : vector<8x32xbf16> to vector<8x8xbf16>
    %cst_74 = arith.constant dense<0.000000e+00> : vector<8x8xf32>
    %239 = tpu.matmul %237, %238, %cst_74 {dimension_numbers = #tpu.dot_dimension_numbers<[1], [0], [0], [1], [0, 0, 1, 1], [], []>} : vector<8x8xbf16>, vector<8x8xbf16>, vector<8x8xf32> -> vector<8x8xf32>
    %240 = arith.truncf %239 : vector<8x8xf32> to vector<8x8xbf16>
    %cst_75 = arith.constant dense<0.000000e+00> : vector<8x32xf32>
    %241 = tpu.matmul %240, %7, %cst_75 {dimension_numbers = #tpu.dot_dimension_numbers<[1], [0], [0], [1], [0, 0, 1, 1], [], []>} : vector<8x8xbf16>, vector<8x32xbf16>, vector<8x32xf32> -> vector<8x32xf32>
    %242 = arith.addf %218, %241 : vector<8x32xf32>
    %243 = vector.broadcast %3 : vector<1x32xf32> to vector<8x32xf32>
    %244 = arith.addf %242, %243 : vector<8x32xf32>
    %c0_76 = arith.constant 0 : index
    %c32_77 = arith.constant 32 : index
    %245 = vector.load %arg7[%c0_76, %c32_77] : memref<8x64xf32, #tpu.memory_space<vmem>>, vector<8x32xf32>
    tpu.vector_store %arg7[%c0_76, %c32_77], %244 {strides = array<i32>} : memref<8x64xf32, #tpu.memory_space<vmem>>, vector<8x32xf32>,
    return
  }
  func.func @transform_0(%arg0: i32) -> (i32, i32) {
    %c0_i32 = arith.constant 0 : i32
    %c0_i32_0 = arith.constant 0 : i32
    %c0_i32_1 = arith.constant 0 : i32
    return %c0_i32, %c0_i32_0 : i32, i32
  }
  func.func @transform_1(%arg0: i32) -> (i32, i32) {
    %c0_i32 = arith.constant 0 : i32
    %c0_i32_0 = arith.constant 0 : i32
    %c0_i32_1 = arith.constant 0 : i32
    return %c0_i32, %c0_i32_0 : i32, i32
  }
  func.func @transform_2(%arg0: i32) -> (i32, i32) {
    %c0_i32 = arith.constant 0 : i32
    %c0_i32_0 = arith.constant 0 : i32
    %c0_i32_1 = arith.constant 0 : i32
    return %c0_i32, %c0_i32_0 : i32, i32
  }
  func.func @transform_3(%arg0: i32) -> (i32, i32) {
    %c0_i32 = arith.constant 0 : i32
    %c0_i32_0 = arith.constant 0 : i32
    %c0_i32_1 = arith.constant 0 : i32
    return %c0_i32, %c0_i32_0 : i32, i32
  }
  func.func @transform_4(%arg0: i32) -> (i32, i32) {
    %c0_i32 = arith.constant 0 : i32
    %c0_i32_0 = arith.constant 0 : i32
    %c0_i32_1 = arith.constant 0 : i32
    return %c0_i32, %c0_i32_0 : i32, i32
  }
  func.func @transform_5(%arg0: i32) -> (i32, i32, i32) {
    %c0_i32 = arith.constant 0 : i32
    %c0_i32_0 = arith.constant 0 : i32
    %c0_i32_1 = arith.constant 0 : i32
    %c0_i32_2 = arith.constant 0 : i32
    return %c0_i32, %c0_i32_0, %c0_i32_1 : i32, i32, i32
  }
  func.func @transform_6(%arg0: i32) -> (i32, i32) {
    %c0_i32 = arith.constant 0 : i32
    %c0_i32_0 = arith.constant 0 : i32
    %c0_i32_1 = arith.constant 0 : i32
    return %c0_i32, %c0_i32_0 : i32, i32
  }
}

</mosaic_0001>

<llo_original>
// kernel: tpu_custom_call.1
$region0: #{tpu_custom_call.1}
  #allocation0 [shape = 'u32[]', space=smem, size = 0x4, offset = 0x4, fixed_abs, tag = 'smem constant byte address 0x4 - core index']
  #allocation1 [shape = 'u32[144,128]{1,0:T(1,128)}', space=vmem, size = 0x12000, scoped, tag = 'internal scratch']
  %s0 = inlined_call_operand.hbm [shape: f32[8,64], index: 0, kind: input, shape index: {}]
  %s1 = inlined_call_operand.hbm [shape: bf16[32,96], index: 1, kind: input, shape index: {}]
  %s2 = inlined_call_operand.vmem [shape: f32[1,96], index: 2, kind: input, shape index: {}]
  %s3 = inlined_call_operand.hbm [shape: bf16[32,32], index: 3, kind: input, shape index: {}]
  %s4 = inlined_call_operand.vmem [shape: f32[1,32], index: 4, kind: input, shape index: {}]
  %s5 = inlined_call_operand.vmem [shape: f32[2,8,8], index: 5, kind: input, shape index: {}]
  %s6 = inlined_call_operand.hbm [shape: f32[8,64], index: 6, kind: output, shape index: {}]
  %s7 = sld [smem:[#allocation0]]
  $region46: #{tpu_custom_call.1} parent=0
    _
  %s9 = ssub.s32 1, %s7
  %s10 = scalar_select 0, %s9, %s7
  $region1: #{tpu_custom_call.1} parent=0
    #allocation2 [shape = 'u8[4096]{0}', space=vmem, size = 0x1000, scoped, tag = 'input window, operand 0, single buffered']
    #allocation3 [shape = 's32[1]{0}', space=sflag, size = 0x4, scoped, tag = 'scoped memory for tpu_custom_call.1']
    #allocation4 [shape = 's32[1]{0}', space=sflag, size = 0x4, scoped, tag = 'scoped memory for tpu_custom_call.1']
    #allocation5 [shape = 'u8[8192]{0}', space=vmem, size = 0x2000, scoped, tag = 'input window, operand 1, single buffered']
    #allocation6 [shape = 's32[1]{0}', space=sflag, size = 0x4, scoped, tag = 'scoped memory for tpu_custom_call.1']
    #allocation7 [shape = 'u8[8192]{0}', space=vmem, size = 0x2000, scoped, tag = 'input window, operand 3, single buffered']
    #allocation8 [shape = 'u8[4096]{0}', space=vmem, size = 0x1000, scoped, tag = 'output window, operand 0, single buffered']
    %11 = vsyncpa [#allocation3], 0
    %12 = vsyncpa [#allocation6], 0
    %13 = vsyncpa [#allocation4], 0
    // Predicated region
    $region2: #{tpu_custom_call.1} parent=1 // pred_check
      _
    $region3: #{tpu_custom_call.1} parent=1 // pred_check_branch
      %15 = sbr.rel (0) target = $region5
    $region4: #{tpu_custom_call.1} parent=1 // pred_region
      %s17 = ssub.s32 128, 128
      %18 = vsyncadd [#allocation3], %s17
      %s20 = sshll.u32 [#allocation2], 4
      %s21 = int_to_ptr.vmem [resolvable:$true] %s20
      %23 = dma.hbm_to_vmem [thread:$0]  %s0, 128, %s21, [#allocation3]
    $region5: #{tpu_custom_call.1} parent=1 // pred_fallthru
      _
    // Predicated region
    $region6: #{tpu_custom_call.1} parent=1 // pred_check
      _
    $region7: #{tpu_custom_call.1} parent=1 // pred_check_branch
      %25 = sbr.rel (0) target = $region9
    $region8: #{tpu_custom_call.1} parent=1 // pred_region
      %s27 = ssub.s32 256, 256
      %28 = vsyncadd [#allocation6], %s27
      %s29 = sshll.u32 [#allocation5], 4
      %s30 = int_to_ptr.vmem [resolvable:$true] %s29
      %35 = dma.hbm_to_vmem [thread:$0]  %s1, 256, %s30, [#allocation6], 64, 64, 4
    $region9: #{tpu_custom_call.1} parent=1 // pred_fallthru
      _
    // Predicated region
    $region10: #{tpu_custom_call.1} parent=1 // pred_check
      _
    $region11: #{tpu_custom_call.1} parent=1 // pred_check_branch
      %37 = sbr.rel (0) target = $region13
    $region12: #{tpu_custom_call.1} parent=1 // pred_region
      _
    $region13: #{tpu_custom_call.1} parent=1 // pred_fallthru
      _
    // Predicated region
    $region14: #{tpu_custom_call.1} parent=1 // pred_check
      _
    $region15: #{tpu_custom_call.1} parent=1 // pred_check_branch
      %39 = sbr.rel (0) target = $region17
    $region16: #{tpu_custom_call.1} parent=1 // pred_region
      %s41 = ssub.s32 256, 256
      %42 = vsyncadd [#allocation6], %s41
      %s43 = sshll.u32 [#allocation7], 4
      %s44 = int_to_ptr.vmem [resolvable:$true] %s43
      %49 = dma.hbm_to_vmem [thread:$0]  %s3, 256, %s44, [#allocation6], 64, 64, 4
    $region17: #{tpu_custom_call.1} parent=1 // pred_fallthru
      _
    // Predicated region
    $region18: #{tpu_custom_call.1} parent=1 // pred_check
      _
    $region19: #{tpu_custom_call.1} parent=1 // pred_check_branch
      %51 = sbr.rel (0) target = $region21
    $region20: #{tpu_custom_call.1} parent=1 // pred_region
      _
    $region21: #{tpu_custom_call.1} parent=1 // pred_fallthru
      _
    // Predicated region
    $region22: #{tpu_custom_call.1} parent=1 // pred_check
      _
    $region23: #{tpu_custom_call.1} parent=1 // pred_check_branch
      %53 = sbr.rel (0) target = $region25
    $region24: #{tpu_custom_call.1} parent=1 // pred_region
      _
    $region25: #{tpu_custom_call.1} parent=1 // pred_fallthru
      _
    // Predicated region
    $region26: #{tpu_custom_call.1} parent=1 // pred_check
      _
    $region27: #{tpu_custom_call.1} parent=1 // pred_check_branch
      %55 = sbr.rel (0) target = $region29
    $region28: #{tpu_custom_call.1} parent=1 // pred_region
      %56 = dma.done [#allocation3], 128
    $region29: #{tpu_custom_call.1} parent=1 // pred_fallthru
      _
    // Predicated region
    $region30: #{tpu_custom_call.1} parent=1 // pred_check
      _
    $region31: #{tpu_custom_call.1} parent=1 // pred_check_branch
      %58 = sbr.rel (0) target = $region33
    $region32: #{tpu_custom_call.1} parent=1 // pred_region
      %59 = dma.done [#allocation6], 256
    $region33: #{tpu_custom_call.1} parent=1 // pred_fallthru
      _
    // Predicated region
    $region34: #{tpu_custom_call.1} parent=1 // pred_check
      _
    $region35: #{tpu_custom_call.1} parent=1 // pred_check_branch
      %61 = sbr.rel (0) target = $region37
    $region36: #{tpu_custom_call.1} parent=1 // pred_region
      %62 = dma.done [#allocation6], 256
    $region37: #{tpu_custom_call.1} parent=1 // pred_fallthru
      _
    %v64 = vld [vmem:[#allocation5] sm:$0xf]
    %v65 = vld [vmem:[#allocation5 + $0x4] sm:$0xf]
    %v66 = vld [vmem:[#allocation5 + $0x8] sm:$0xf]
    %v67 = vld [vmem:[#allocation5 + $0xc] sm:$0xf]
    %v68 = vld [vmem:[%s2] sm:$0x1]
    %v69 = vld [vmem:[#allocation7] sm:$0xf]
    %v70 = vld [vmem:[#allocation7 + $0x4] sm:$0xf]
    %v71 = vld [vmem:[#allocation7 + $0x8] sm:$0xf]
    %v72 = vld [vmem:[#allocation7 + $0xc] sm:$0xf]
    %v73 = vld [vmem:[%s4] sm:$0x1]
    %v74 = vlaneseq
    %v75 = vshrl.u32 %v74, 7
    %v76 = vlaneseq
    %v77 = vand.u32 %v76, 127
    %vm78 = vcmp.gt.s32.totalorder %v77, %v75
    %vm79 = vcmp.eq.s32.totalorder %v75, %v77
    %v80 = vld [vmem:[#allocation2] sm:$0xff]
    %v81 = vpack.c.bf16 %v80, %v80
    %v83 = vlaneseq
    %v84 = vshrl.u32 %v83, 7
    %v85 = vsub.s32 0, %v84
    %v86 = vrot.slane %v68, %v85
    %v92 = vunpack.c.l.b16 %v64
    %v93 = vunpack.c.l.b16 %v65
    %v94 = vunpack.c.l.b16 %v66
    %v95 = vunpack.c.l.b16 %v67
    %v96 = vpack.c.b16 %v93, %v92
    %v97 = vpack.c.b16 %v95, %v94
    %vm100 = vcmask 261120
    %v102 = vsel %vm100, %v81, 0
    %104 = vmatprep.subr.bf16.mxu0 0
    %105 = vmatpush1.bf16.msra.mxu0 %v96
    %106 = vmatprep.subr.bf16.mxu0 0
    %107 = vmatpush1.bf16.msra.mxu0 %v97
    %108 = vmatprep.subr.bf16.mxu0 0
    %109 = vmatpush1.bf16.msra.mxu0 0
    %110 = vmatprep.subr.bf16.mxu0 0
    %111 = vmatpush1.bf16.msra.mxu0 0
    %112 = vmatprep.subr.bf16.mxu0 0
    %113 = vmatpush1.bf16.msra.mxu0 0
    %114 = vmatprep.subr.bf16.mxu0 0
    %115 = vmatpush1.bf16.msra.mxu0 0
    %116 = vmatprep.subr.bf16.mxu0 0
    %117 = vmatpush1.bf16.msra.mxu0 0
    %118 = vmatprep.subr.bf16.mxu0 0
    %119 = vmatpush1.bf16.msra.mxu0 0
    %120 = vmatprep.subr.bf16.mxu0 0
    %121 = vmatpush1.bf16.msra.mxu0 0
    %122 = vmatprep.subr.bf16.mxu0 0
    %123 = vmatpush1.bf16.msra.mxu0 0
    %124 = vmatprep.subr.bf16.mxu0 0
    %125 = vmatpush1.bf16.msra.mxu0 0
    %126 = vmatprep.subr.bf16.mxu0 0
    %127 = vmatpush1.bf16.msra.mxu0 0
    %128 = vmatprep.subr.bf16.mxu0 0
    %129 = vmatpush1.bf16.msra.mxu0 0
    %130 = vmatprep.subr.bf16.mxu0 0
    %131 = vmatpush1.bf16.msra.mxu0 0
    %132 = vmatprep.subr.bf16.mxu0 0
    %133 = vmatpush1.bf16.msra.mxu0 0
    %134 = vmatprep.subr.bf16.mxu0 0
    %135 = vmatpush1.bf16.msra.mxu0 0
    %136 = vmatprep.mubr.bf16.mxu0 0
    %137 = vmatmul.mubr.bf16.gmra.mrb[0].mxu0 %v102
    %v138 = vpop.f32.mrb[0].mxu0
    %v139 = vadd.f32 %v86, %v138
    %v140 = vpop.f32.mrb[0].mxu0
    %v141 = vpop.f32.mrb[0].mxu0
    %v142 = vpop.f32.mrb[0].mxu0
    %143 = vdwg.mxu0
    %v144 = vld [vmem:[%s5] sm:$0xff]
    %v145 = vsel %vm79, 1, 0
    %v146 = vcvt.s32.f32 %v145
    %v147 = vadd.f32 %v144, %v146
    %vm148 = vcmp.eq.f32.partialorder %v147, 0.0
    %vm149 = vmor %vm148, %vm78
    %v150 = vpack.c.bf16 %v139, %v139
    %152 = vrot.lane.b32.xlu0 %v150, 96
    %v153 = vpop.permute.xlu0 %152
    %vm154 = vcmask 64512
    %v156 = vsel %vm154, %v150, 0
    %v159 = vsel %vm154, %v153, 0
    %161 = vmatprep.subr.bf16.mxu0 0
    %162 = vmatpush1.bf16.xpose.msra.mxu0 %v159
    %163 = vmatprep.subr.bf16.mxu0 0
    %164 = vmatpush1.bf16.xpose.msra.mxu0 0
    %165 = vmatprep.subr.bf16.mxu0 0
    %166 = vmatpush1.bf16.xpose.msra.mxu0 0
    %167 = vmatprep.subr.bf16.mxu0 0
    %168 = vmatpush1.bf16.xpose.msra.mxu0 0
    %169 = vmatprep.subr.bf16.mxu0 0
    %170 = vmatpush1.bf16.xpose.msra.mxu0 0
    %171 = vmatprep.subr.bf16.mxu0 0
    %172 = vmatpush1.bf16.xpose.msra.mxu0 0
    %173 = vmatprep.subr.bf16.mxu0 0
    %174 = vmatpush1.bf16.xpose.msra.mxu0 0
    %175 = vmatprep.subr.bf16.mxu0 0
    %176 = vmatpush1.bf16.xpose.msra.mxu0 0
    %177 = vmatprep.subr.bf16.mxu0 0
    %178 = vmatpush1.bf16.xpose.msra.mxu0 0
    %179 = vmatprep.subr.bf16.mxu0 0
    %180 = vmatpush1.bf16.xpose.msra.mxu0 0
    %181 = vmatprep.subr.bf16.mxu0 0
    %182 = vmatpush1.bf16.xpose.msra.mxu0 0
    %183 = vmatprep.subr.bf16.mxu0 0
    %184 = vmatpush1.bf16.xpose.msra.mxu0 0
    %185 = vmatprep.subr.bf16.mxu0 0
    %186 = vmatpush1.bf16.xpose.msra.mxu0 0
    %187 = vmatprep.subr.bf16.mxu0 0
    %188 = vmatpush1.bf16.xpose.msra.mxu0 0
    %189 = vmatprep.subr.bf16.mxu0 0
    %190 = vmatpush1.bf16.xpose.msra.mxu0 0
    %191 = vmatprep.subr.bf16.mxu0 0
    %192 = vmatpush1.bf16.xpose.msra.mxu0 0
    %193 = vmatprep.mubr.bf16.mxu0 0
    %194 = vmatmul.mubr.bf16.gmra.mrb[0].mxu0 %v156
    %v195 = vpop.f32.mrb[0].mxu0
    %v196 = vadd.f32 0.0, %v195
    %v197 = vpop.f32.mrb[0].mxu0
    %v198 = vpop.f32.mrb[0].mxu0
    %v199 = vpop.f32.mrb[0].mxu0
    %200 = vdwg.mxu0
    %v201 = vmul.f32 %v196, 0.35355338
    %v202 = vsel %vm149, -1e+30, %v201
    %v203 = vsel %vm154, %v202, -inf
    %204 = vmax.xlane.f32.xlu0 %v203
    %v205 = vpop.xlane.xlu0 %204
    %v206 = vsub.f32 %v202, %v205
    %v207 = vmul.f32 %v206, 1.442695
    %v208 = vpow.pop %v207
    %v209 = vsel %vm154, %v208, 0.0
    %210 = vadd.xlane.f32.xlu0 %v209
    %v211 = vpop.xlane.xlu0 %210
    %v212 = vrcp.pop %v211
    %v213 = vmul.f32 %v208, %v212
    %v214 = vmul.f32 %v213, %v147
    %v215 = vpack.c.bf16 %v214, %v214
    %216 = vrot.lane.b32.xlu0 %v150, 64
    %v217 = vpop.permute.xlu0 %216
    %v219 = vsel %vm154, %v215, 0
    %vm221 = vcmask 1043456
    %v223 = vsel %vm221, %v217, 0
    %225 = vmatprep.subr.bf16.mxu0 0
    %226 = vmatpush1.bf16.msra.mxu0 %v223
    %227 = vmatprep.subr.bf16.mxu0 0
    %228 = vmatpush1.bf16.msra.mxu0 0
    %229 = vmatprep.subr.bf16.mxu0 0
    %230 = vmatpush1.bf16.msra.mxu0 0
    %231 = vmatprep.subr.bf16.mxu0 0
    %232 = vmatpush1.bf16.msra.mxu0 0
    %233 = vmatprep.subr.bf16.mxu0 0
    %234 = vmatpush1.bf16.msra.mxu0 0
    %235 = vmatprep.subr.bf16.mxu0 0
    %236 = vmatpush1.bf16.msra.mxu0 0
    %237 = vmatprep.subr.bf16.mxu0 0
    %238 = vmatpush1.bf16.msra.mxu0 0
    %239 = vmatprep.subr.bf16.mxu0 0
    %240 = vmatpush1.bf16.msra.mxu0 0
    %241 = vmatprep.subr.bf16.mxu0 0
    %242 = vmatpush1.bf16.msra.mxu0 0
    %243 = vmatprep.subr.bf16.mxu0 0
    %244 = vmatpush1.bf16.msra.mxu0 0
    %245 = vmatprep.subr.bf16.mxu0 0
    %246 = vmatpush1.bf16.msra.mxu0 0
    %247 = vmatprep.subr.bf16.mxu0 0
    %248 = vmatpush1.bf16.msra.mxu0 0
    %249 = vmatprep.subr.bf16.mxu0 0
    %250 = vmatpush1.bf16.msra.mxu0 0
    %251 = vmatprep.subr.bf16.mxu0 0
    %252 = vmatpush1.bf16.msra.mxu0 0
    %253 = vmatprep.subr.bf16.mxu0 0
    %254 = vmatpush1.bf16.msra.mxu0 0
    %255 = vmatprep.subr.bf16.mxu0 0
    %256 = vmatpush1.bf16.msra.mxu0 0
    %257 = vmatprep.mubr.bf16.mxu0 0
    %258 = vmatmul.mubr.bf16.gmra.mrb[0].mxu0 %v219
    %v259 = vpop.f32.mrb[0].mxu0
    %v260 = vadd.f32 0.0, %v259
    %v261 = vpop.f32.mrb[0].mxu0
    %v262 = vpop.f32.mrb[0].mxu0
    %v263 = vpop.f32.mrb[0].mxu0
    %264 = vdwg.mxu0
    %v265 = vpack.c.bf16 %v260, %v260
    %266 = vrot.lane.b32.xlu0 %v150, 120
    %v267 = vpop.permute.xlu0 %266
    %268 = vrot.lane.b32.xlu0 %v150, 88
    %v269 = vpop.permute.xlu0 %268
    %v271 = vsel %vm154, %v267, 0
    %v274 = vsel %vm154, %v269, 0
    %276 = vmatprep.subr.bf16.mxu0 0
    %277 = vmatpush1.bf16.xpose.msra.mxu0 %v274
    %278 = vmatprep.subr.bf16.mxu0 0
    %279 = vmatpush1.bf16.xpose.msra.mxu0 0
    %280 = vmatprep.subr.bf16.mxu0 0
    %281 = vmatpush1.bf16.xpose.msra.mxu0 0
    %282 = vmatprep.subr.bf16.mxu0 0
    %283 = vmatpush1.bf16.xpose.msra.mxu0 0
    %284 = vmatprep.subr.bf16.mxu0 0
    %285 = vmatpush1.bf16.xpose.msra.mxu0 0
    %286 = vmatprep.subr.bf16.mxu0 0
    %287 = vmatpush1.bf16.xpose.msra.mxu0 0
    %288 = vmatprep.subr.bf16.mxu0 0
    %289 = vmatpush1.bf16.xpose.msra.mxu0 0
    %290 = vmatprep.subr.bf16.mxu0 0
    %291 = vmatpush1.bf16.xpose.msra.mxu0 0
    %292 = vmatprep.subr.bf16.mxu0 0
    %293 = vmatpush1.bf16.xpose.msra.mxu0 0
    %294 = vmatprep.subr.bf16.mxu0 0
    %295 = vmatpush1.bf16.xpose.msra.mxu0 0
    %296 = vmatprep.subr.bf16.mxu0 0
    %297 = vmatpush1.bf16.xpose.msra.mxu0 0
    %298 = vmatprep.subr.bf16.mxu0 0
    %299 = vmatpush1.bf16.xpose.msra.mxu0 0
    %300 = vmatprep.subr.bf16.mxu0 0
    %301 = vmatpush1.bf16.xpose.msra.mxu0 0
    %302 = vmatprep.subr.bf16.mxu0 0
    %303 = vmatpush1.bf16.xpose.msra.mxu0 0
    %304 = vmatprep.subr.bf16.mxu0 0
    %305 = vmatpush1.bf16.xpose.msra.mxu0 0
    %306 = vmatprep.subr.bf16.mxu0 0
    %307 = vmatpush1.bf16.xpose.msra.mxu0 0
    %308 = vmatprep.mubr.bf16.mxu0 0
    %309 = vmatmul.mubr.bf16.gmra.mrb[0].mxu0 %v271
    %v310 = vpop.f32.mrb[0].mxu0
    %v311 = vadd.f32 0.0, %v310
    %v312 = vpop.f32.mrb[0].mxu0
    %v313 = vpop.f32.mrb[0].mxu0
    %v314 = vpop.f32.mrb[0].mxu0
    %315 = vdwg.mxu0
    %v316 = vmul.f32 %v311, 0.35355338
    %v317 = vsel %vm149, -1e+30, %v316
    %v318 = vsel %vm154, %v317, -inf
    %319 = vmax.xlane.f32.xlu0 %v318
    %v320 = vpop.xlane.xlu0 %319
    %v321 = vsub.f32 %v317, %v320
    %v322 = vmul.f32 %v321, 1.442695
    %v323 = vpow.pop %v322
    %v324 = vsel %vm154, %v323, 0.0
    %325 = vadd.xlane.f32.xlu0 %v324
    %v326 = vpop.xlane.xlu0 %325
    %v327 = vrcp.pop %v326
    %v328 = vmul.f32 %v323, %v327
    %v329 = vmul.f32 %v328, %v147
    %v330 = vpack.c.bf16 %v329, %v329
    %331 = vrot.lane.b32.xlu0 %v150, 56
    %v332 = vpop.permute.xlu0 %331
    %v334 = vsel %vm154, %v330, 0
    %v337 = vsel %vm221, %v332, 0
    %339 = vmatprep.subr.bf16.mxu0 0
    %340 = vmatpush1.bf16.msra.mxu0 %v337
    %341 = vmatprep.subr.bf16.mxu0 0
    %342 = vmatpush1.bf16.msra.mxu0 0
    %343 = vmatprep.subr.bf16.mxu0 0
    %344 = vmatpush1.bf16.msra.mxu0 0
    %345 = vmatprep.subr.bf16.mxu0 0
    %346 = vmatpush1.bf16.msra.mxu0 0
    %347 = vmatprep.subr.bf16.mxu0 0
    %348 = vmatpush1.bf16.msra.mxu0 0
    %349 = vmatprep.subr.bf16.mxu0 0
    %350 = vmatpush1.bf16.msra.mxu0 0
    %351 = vmatprep.subr.bf16.mxu0 0
    %352 = vmatpush1.bf16.msra.mxu0 0
    %353 = vmatprep.subr.bf16.mxu0 0
    %354 = vmatpush1.bf16.msra.mxu0 0
    %355 = vmatprep.subr.bf16.mxu0 0
    %356 = vmatpush1.bf16.msra.mxu0 0
    %357 = vmatprep.subr.bf16.mxu0 0
    %358 = vmatpush1.bf16.msra.mxu0 0
    %359 = vmatprep.subr.bf16.mxu0 0
    %360 = vmatpush1.bf16.msra.mxu0 0
    %361 = vmatprep.subr.bf16.mxu0 0
    %362 = vmatpush1.bf16.msra.mxu0 0
    %363 = vmatprep.subr.bf16.mxu0 0
    %364 = vmatpush1.bf16.msra.mxu0 0
    %365 = vmatprep.subr.bf16.mxu0 0
    %366 = vmatpush1.bf16.msra.mxu0 0
    %367 = vmatprep.subr.bf16.mxu0 0
    %368 = vmatpush1.bf16.msra.mxu0 0
    %369 = vmatprep.subr.bf16.mxu0 0
    %370 = vmatpush1.bf16.msra.mxu0 0
    %371 = vmatprep.mubr.bf16.mxu0 0
    %372 = vmatmul.mubr.bf16.gmra.mrb[0].mxu0 %v334
    %v373 = vpop.f32.mrb[0].mxu0
    %v374 = vadd.f32 0.0, %v373
    %v375 = vpop.f32.mrb[0].mxu0
    %v376 = vpop.f32.mrb[0].mxu0
    %v377 = vpop.f32.mrb[0].mxu0
    %378 = vdwg.mxu0
    %v379 = vpack.c.bf16 %v374, %v374
    %v381 = vsel %vm154, %v379, 0
    %v384 = vsel %vm221, %v70, 0
    %386 = vmatprep.subr.bf16.mxu0 0
    %387 = vmatpush1.bf16.msra.mxu0 %v384
    %388 = vmatprep.subr.bf16.mxu0 0
    %389 = vmatpush1.bf16.msra.mxu0 0
    %390 = vmatprep.subr.bf16.mxu0 0
    %391 = vmatpush1.bf16.msra.mxu0 0
    %392 = vmatprep.subr.bf16.mxu0 0
    %393 = vmatpush1.bf16.msra.mxu0 0
    %394 = vmatprep.subr.bf16.mxu0 0
    %395 = vmatpush1.bf16.msra.mxu0 0
    %396 = vmatprep.subr.bf16.mxu0 0
    %397 = vmatpush1.bf16.msra.mxu0 0
    %398 = vmatprep.subr.bf16.mxu0 0
    %399 = vmatpush1.bf16.msra.mxu0 0
    %400 = vmatprep.subr.bf16.mxu0 0
    %401 = vmatpush1.bf16.msra.mxu0 0
    %402 = vmatprep.subr.bf16.mxu0 0
    %403 = vmatpush1.bf16.msra.mxu0 0
    %404 = vmatprep.subr.bf16.mxu0 0
    %405 = vmatpush1.bf16.msra.mxu0 0
    %406 = vmatprep.subr.bf16.mxu0 0
    %407 = vmatpush1.bf16.msra.mxu0 0
    %408 = vmatprep.subr.bf16.mxu0 0
    %409 = vmatpush1.bf16.msra.mxu0 0
    %410 = vmatprep.subr.bf16.mxu0 0
    %411 = vmatpush1.bf16.msra.mxu0 0
    %412 = vmatprep.subr.bf16.mxu0 0
    %413 = vmatpush1.bf16.msra.mxu0 0
    %414 = vmatprep.subr.bf16.mxu0 0
    %415 = vmatpush1.bf16.msra.mxu0 0
    %416 = vmatprep.subr.bf16.mxu0 0
    %417 = vmatpush1.bf16.msra.mxu0 0
    %418 = vmatprep.mubr.bf16.mxu0 0
    %419 = vmatmul.mubr.bf16.gmra.mrb[0].mxu0 %v381
    %v420 = vpop.f32.mrb[0].mxu0
    %v421 = vadd.f32 0.0, %v420
    %v422 = vpop.f32.mrb[0].mxu0
    %v423 = vpop.f32.mrb[0].mxu0
    %v424 = vpop.f32.mrb[0].mxu0
    %425 = vdwg.mxu0
    %v427 = vsel %vm154, %v265, 0
    %v430 = vsel %vm221, %v69, 0
    %432 = vmatprep.subr.bf16.mxu0 0
    %433 = vmatpush1.bf16.msra.mxu0 %v430
    %434 = vmatprep.subr.bf16.mxu0 0
    %435 = vmatpush1.bf16.msra.mxu0 0
    %436 = vmatprep.subr.bf16.mxu0 0
    %437 = vmatpush1.bf16.msra.mxu0 0
    %438 = vmatprep.subr.bf16.mxu0 0
    %439 = vmatpush1.bf16.msra.mxu0 0
    %440 = vmatprep.subr.bf16.mxu0 0
    %441 = vmatpush1.bf16.msra.mxu0 0
    %442 = vmatprep.subr.bf16.mxu0 0
    %443 = vmatpush1.bf16.msra.mxu0 0
    %444 = vmatprep.subr.bf16.mxu0 0
    %445 = vmatpush1.bf16.msra.mxu0 0
    %446 = vmatprep.subr.bf16.mxu0 0
    %447 = vmatpush1.bf16.msra.mxu0 0
    %448 = vmatprep.subr.bf16.mxu0 0
    %449 = vmatpush1.bf16.msra.mxu0 0
    %450 = vmatprep.subr.bf16.mxu0 0
    %451 = vmatpush1.bf16.msra.mxu0 0
    %452 = vmatprep.subr.bf16.mxu0 0
    %453 = vmatpush1.bf16.msra.mxu0 0
    %454 = vmatprep.subr.bf16.mxu0 0
    %455 = vmatpush1.bf16.msra.mxu0 0
    %456 = vmatprep.subr.bf16.mxu0 0
    %457 = vmatpush1.bf16.msra.mxu0 0
    %458 = vmatprep.subr.bf16.mxu0 0
    %459 = vmatpush1.bf16.msra.mxu0 0
    %460 = vmatprep.subr.bf16.mxu0 0
    %461 = vmatpush1.bf16.msra.mxu0 0
    %462 = vmatprep.subr.bf16.mxu0 0
    %463 = vmatpush1.bf16.msra.mxu0 0
    %464 = vmatprep.mubr.bf16.mxu0 0
    %465 = vmatmul.mubr.bf16.gmra.mrb[0].mxu0 %v427
    %v466 = vpop.f32.mrb[0].mxu0
    %v467 = vadd.f32 %v421, %v466
    %v468 = vpop.f32.mrb[0].mxu0
    %v469 = vpop.f32.mrb[0].mxu0
    %v470 = vpop.f32.mrb[0].mxu0
    %471 = vdwg.mxu0
    %472 = vrot.lane.b32.xlu0 %v150, 112
    %v473 = vpop.permute.xlu0 %472
    %474 = vrot.lane.b32.xlu0 %v150, 80
    %v475 = vpop.permute.xlu0 %474
    %v477 = vsel %vm154, %v473, 0
    %v480 = vsel %vm154, %v475, 0
    %482 = vmatprep.subr.bf16.mxu0 0
    %483 = vmatpush1.bf16.xpose.msra.mxu0 %v480
    %484 = vmatprep.subr.bf16.mxu0 0
    %485 = vmatpush1.bf16.xpose.msra.mxu0 0
    %486 = vmatprep.subr.bf16.mxu0 0
    %487 = vmatpush1.bf16.xpose.msra.mxu0 0
    %488 = vmatprep.subr.bf16.mxu0 0
    %489 = vmatpush1.bf16.xpose.msra.mxu0 0
    %490 = vmatprep.subr.bf16.mxu0 0
    %491 = vmatpush1.bf16.xpose.msra.mxu0 0
    %492 = vmatprep.subr.bf16.mxu0 0
    %493 = vmatpush1.bf16.xpose.msra.mxu0 0
    %494 = vmatprep.subr.bf16.mxu0 0
    %495 = vmatpush1.bf16.xpose.msra.mxu0 0
    %496 = vmatprep.subr.bf16.mxu0 0
    %497 = vmatpush1.bf16.xpose.msra.mxu0 0
    %498 = vmatprep.subr.bf16.mxu0 0
    %499 = vmatpush1.bf16.xpose.msra.mxu0 0
    %500 = vmatprep.subr.bf16.mxu0 0
    %501 = vmatpush1.bf16.xpose.msra.mxu0 0
    %502 = vmatprep.subr.bf16.mxu0 0
    %503 = vmatpush1.bf16.xpose.msra.mxu0 0
    %504 = vmatprep.subr.bf16.mxu0 0
    %505 = vmatpush1.bf16.xpose.msra.mxu0 0
    %506 = vmatprep.subr.bf16.mxu0 0
    %507 = vmatpush1.bf16.xpose.msra.mxu0 0
    %508 = vmatprep.subr.bf16.mxu0 0
    %509 = vmatpush1.bf16.xpose.msra.mxu0 0
    %510 = vmatprep.subr.bf16.mxu0 0
    %511 = vmatpush1.bf16.xpose.msra.mxu0 0
    %512 = vmatprep.subr.bf16.mxu0 0
    %513 = vmatpush1.bf16.xpose.msra.mxu0 0
    %514 = vmatprep.mubr.bf16.mxu0 0
    %515 = vmatmul.mubr.bf16.gmra.mrb[0].mxu0 %v477
    %v516 = vpop.f32.mrb[0].mxu0
    %v517 = vadd.f32 0.0, %v516
    %v518 = vpop.f32.mrb[0].mxu0
    %v519 = vpop.f32.mrb[0].mxu0
    %v520 = vpop.f32.mrb[0].mxu0
    %521 = vdwg.mxu0
    %v522 = vmul.f32 %v517, 0.35355338
    %v523 = vsel %vm149, -1e+30, %v522
    %v524 = vsel %vm154, %v523, -inf
    %525 = vmax.xlane.f32.xlu0 %v524
    %v526 = vpop.xlane.xlu0 %525
    %v527 = vsub.f32 %v523, %v526
    %v528 = vmul.f32 %v527, 1.442695
    %v529 = vpow.pop %v528
    %v530 = vsel %vm154, %v529, 0.0
    %531 = vadd.xlane.f32.xlu0 %v530
    %v532 = vpop.xlane.xlu0 %531
    %v533 = vrcp.pop %v532
    %v534 = vmul.f32 %v529, %v533
    %v535 = vmul.f32 %v534, %v147
    %v536 = vpack.c.bf16 %v535, %v535
    %537 = vrot.lane.b32.xlu0 %v150, 48
    %v538 = vpop.permute.xlu0 %537
    %v540 = vsel %vm154, %v536, 0
    %v543 = vsel %vm221, %v538, 0
    %545 = vmatprep.subr.bf16.mxu0 0
    %546 = vmatpush1.bf16.msra.mxu0 %v543
    %547 = vmatprep.subr.bf16.mxu0 0
    %548 = vmatpush1.bf16.msra.mxu0 0
    %549 = vmatprep.subr.bf16.mxu0 0
    %550 = vmatpush1.bf16.msra.mxu0 0
    %551 = vmatprep.subr.bf16.mxu0 0
    %552 = vmatpush1.bf16.msra.mxu0 0
    %553 = vmatprep.subr.bf16.mxu0 0
    %554 = vmatpush1.bf16.msra.mxu0 0
    %555 = vmatprep.subr.bf16.mxu0 0
    %556 = vmatpush1.bf16.msra.mxu0 0
    %557 = vmatprep.subr.bf16.mxu0 0
    %558 = vmatpush1.bf16.msra.mxu0 0
    %559 = vmatprep.subr.bf16.mxu0 0
    %560 = vmatpush1.bf16.msra.mxu0 0
    %561 = vmatprep.subr.bf16.mxu0 0
    %562 = vmatpush1.bf16.msra.mxu0 0
    %563 = vmatprep.subr.bf16.mxu0 0
    %564 = vmatpush1.bf16.msra.mxu0 0
    %565 = vmatprep.subr.bf16.mxu0 0
    %566 = vmatpush1.bf16.msra.mxu0 0
    %567 = vmatprep.subr.bf16.mxu0 0
    %568 = vmatpush1.bf16.msra.mxu0 0
    %569 = vmatprep.subr.bf16.mxu0 0
    %570 = vmatpush1.bf16.msra.mxu0 0
    %571 = vmatprep.subr.bf16.mxu0 0
    %572 = vmatpush1.bf16.msra.mxu0 0
    %573 = vmatprep.subr.bf16.mxu0 0
    %574 = vmatpush1.bf16.msra.mxu0 0
    %575 = vmatprep.subr.bf16.mxu0 0
    %576 = vmatpush1.bf16.msra.mxu0 0
    %577 = vmatprep.mubr.bf16.mxu0 0
    %578 = vmatmul.mubr.bf16.gmra.mrb[0].mxu0 %v540
    %v579 = vpop.f32.mrb[0].mxu0
    %v580 = vadd.f32 0.0, %v579
    %v581 = vpop.f32.mrb[0].mxu0
    %v582 = vpop.f32.mrb[0].mxu0
    %v583 = vpop.f32.mrb[0].mxu0
    %584 = vdwg.mxu0
    %v585 = vpack.c.bf16 %v580, %v580
    %v587 = vsel %vm154, %v585, 0
    %v590 = vsel %vm221, %v71, 0
    %592 = vmatprep.subr.bf16.mxu0 0
    %593 = vmatpush1.bf16.msra.mxu0 %v590
    %594 = vmatprep.subr.bf16.mxu0 0
    %595 = vmatpush1.bf16.msra.mxu0 0
    %596 = vmatprep.subr.bf16.mxu0 0
    %597 = vmatpush1.bf16.msra.mxu0 0
    %598 = vmatprep.subr.bf16.mxu0 0
    %599 = vmatpush1.bf16.msra.mxu0 0
    %600 = vmatprep.subr.bf16.mxu0 0
    %601 = vmatpush1.bf16.msra.mxu0 0
    %602 = vmatprep.subr.bf16.mxu0 0
    %603 = vmatpush1.bf16.msra.mxu0 0
    %604 = vmatprep.subr.bf16.mxu0 0
    %605 = vmatpush1.bf16.msra.mxu0 0
    %606 = vmatprep.subr.bf16.mxu0 0
    %607 = vmatpush1.bf16.msra.mxu0 0
    %608 = vmatprep.subr.bf16.mxu0 0
    %609 = vmatpush1.bf16.msra.mxu0 0
    %610 = vmatprep.subr.bf16.mxu0 0
    %611 = vmatpush1.bf16.msra.mxu0 0
    %612 = vmatprep.subr.bf16.mxu0 0
    %613 = vmatpush1.bf16.msra.mxu0 0
    %614 = vmatprep.subr.bf16.mxu0 0
    %615 = vmatpush1.bf16.msra.mxu0 0
    %616 = vmatprep.subr.bf16.mxu0 0
    %617 = vmatpush1.bf16.msra.mxu0 0
    %618 = vmatprep.subr.bf16.mxu0 0
    %619 = vmatpush1.bf16.msra.mxu0 0
    %620 = vmatprep.subr.bf16.mxu0 0
    %621 = vmatpush1.bf16.msra.mxu0 0
    %622 = vmatprep.subr.bf16.mxu0 0
    %623 = vmatpush1.bf16.msra.mxu0 0
    %624 = vmatprep.mubr.bf16.mxu0 0
    %625 = vmatmul.mubr.bf16.gmra.mrb[0].mxu0 %v587
    %v626 = vpop.f32.mrb[0].mxu0
    %v627 = vadd.f32 0.0, %v626
    %v628 = vpop.f32.mrb[0].mxu0
    %v629 = vpop.f32.mrb[0].mxu0
    %v630 = vpop.f32.mrb[0].mxu0
    %631 = vdwg.mxu0
    %v632 = vadd.f32 %v467, %v627
    %633 = vrot.lane.b32.xlu0 %v150, 104
    %v634 = vpop.permute.xlu0 %633
    %635 = vrot.lane.b32.xlu0 %v150, 72
    %v636 = vpop.permute.xlu0 %635
    %v638 = vsel %vm154, %v634, 0
    %v641 = vsel %vm154, %v636, 0
    %643 = vmatprep.subr.bf16.mxu0 0
    %644 = vmatpush1.bf16.xpose.msra.mxu0 %v641
    %645 = vmatprep.subr.bf16.mxu0 0
    %646 = vmatpush1.bf16.xpose.msra.mxu0 0
    %647 = vmatprep.subr.bf16.mxu0 0
    %648 = vmatpush1.bf16.xpose.msra.mxu0 0
    %649 = vmatprep.subr.bf16.mxu0 0
    %650 = vmatpush1.bf16.xpose.msra.mxu0 0
    %651 = vmatprep.subr.bf16.mxu0 0
    %652 = vmatpush1.bf16.xpose.msra.mxu0 0
    %653 = vmatprep.subr.bf16.mxu0 0
    %654 = vmatpush1.bf16.xpose.msra.mxu0 0
    %655 = vmatprep.subr.bf16.mxu0 0
    %656 = vmatpush1.bf16.xpose.msra.mxu0 0
    %657 = vmatprep.subr.bf16.mxu0 0
    %658 = vmatpush1.bf16.xpose.msra.mxu0 0
    %659 = vmatprep.subr.bf16.mxu0 0
    %660 = vmatpush1.bf16.xpose.msra.mxu0 0
    %661 = vmatprep.subr.bf16.mxu0 0
    %662 = vmatpush1.bf16.xpose.msra.mxu0 0
    %663 = vmatprep.subr.bf16.mxu0 0
    %664 = vmatpush1.bf16.xpose.msra.mxu0 0
    %665 = vmatprep.subr.bf16.mxu0 0
    %666 = vmatpush1.bf16.xpose.msra.mxu0 0
    %667 = vmatprep.subr.bf16.mxu0 0
    %668 = vmatpush1.bf16.xpose.msra.mxu0 0
    %669 = vmatprep.subr.bf16.mxu0 0
    %670 = vmatpush1.bf16.xpose.msra.mxu0 0
    %671 = vmatprep.subr.bf16.mxu0 0
    %672 = vmatpush1.bf16.xpose.msra.mxu0 0
    %673 = vmatprep.subr.bf16.mxu0 0
    %674 = vmatpush1.bf16.xpose.msra.mxu0 0
    %675 = vmatprep.mubr.bf16.mxu0 0
    %676 = vmatmul.mubr.bf16.gmra.mrb[0].mxu0 %v638
    %v677 = vpop.f32.mrb[0].mxu0
    %v678 = vadd.f32 0.0, %v677
    %v679 = vpop.f32.mrb[0].mxu0
    %v680 = vpop.f32.mrb[0].mxu0
    %v681 = vpop.f32.mrb[0].mxu0
    %682 = vdwg.mxu0
    %v683 = vmul.f32 %v678, 0.35355338
    %v684 = vsel %vm149, -1e+30, %v683
    %v685 = vsel %vm154, %v684, -inf
    %686 = vmax.xlane.f32.xlu0 %v685
    %v687 = vpop.xlane.xlu0 %686
    %v688 = vsub.f32 %v684, %v687
    %v689 = vmul.f32 %v688, 1.442695
    %v690 = vpow.pop %v689
    %v691 = vsel %vm154, %v690, 0.0
    %692 = vadd.xlane.f32.xlu0 %v691
    %v693 = vpop.xlane.xlu0 %692
    %v694 = vrcp.pop %v693
    %v695 = vmul.f32 %v690, %v694
    %v696 = vmul.f32 %v695, %v147
    %v697 = vpack.c.bf16 %v696, %v696
    %698 = vrot.lane.b32.xlu0 %v150, 40
    %v699 = vpop.permute.xlu0 %698
    %v701 = vsel %vm154, %v697, 0
    %v704 = vsel %vm221, %v699, 0
    %706 = vmatprep.subr.bf16.mxu0 0
    %707 = vmatpush1.bf16.msra.mxu0 %v704
    %708 = vmatprep.subr.bf16.mxu0 0
    %709 = vmatpush1.bf16.msra.mxu0 0
    %710 = vmatprep.subr.bf16.mxu0 0
    %711 = vmatpush1.bf16.msra.mxu0 0
    %712 = vmatprep.subr.bf16.mxu0 0
    %713 = vmatpush1.bf16.msra.mxu0 0
    %714 = vmatprep.subr.bf16.mxu0 0
    %715 = vmatpush1.bf16.msra.mxu0 0
    %716 = vmatprep.subr.bf16.mxu0 0
    %717 = vmatpush1.bf16.msra.mxu0 0
    %718 = vmatprep.subr.bf16.mxu0 0
    %719 = vmatpush1.bf16.msra.mxu0 0
    %720 = vmatprep.subr.bf16.mxu0 0
    %721 = vmatpush1.bf16.msra.mxu0 0
    %722 = vmatprep.subr.bf16.mxu0 0
    %723 = vmatpush1.bf16.msra.mxu0 0
    %724 = vmatprep.subr.bf16.mxu0 0
    %725 = vmatpush1.bf16.msra.mxu0 0
    %726 = vmatprep.subr.bf16.mxu0 0
    %727 = vmatpush1.bf16.msra.mxu0 0
    %728 = vmatprep.subr.bf16.mxu0 0
    %729 = vmatpush1.bf16.msra.mxu0 0
    %730 = vmatprep.subr.bf16.mxu0 0
    %731 = vmatpush1.bf16.msra.mxu0 0
    %732 = vmatprep.subr.bf16.mxu0 0
    %733 = vmatpush1.bf16.msra.mxu0 0
    %734 = vmatprep.subr.bf16.mxu0 0
    %735 = vmatpush1.bf16.msra.mxu0 0
    %736 = vmatprep.subr.bf16.mxu0 0
    %737 = vmatpush1.bf16.msra.mxu0 0
    %738 = vmatprep.mubr.bf16.mxu0 0
    %739 = vmatmul.mubr.bf16.gmra.mrb[0].mxu0 %v701
    %v740 = vpop.f32.mrb[0].mxu0
    %v741 = vadd.f32 0.0, %v740
    %v742 = vpop.f32.mrb[0].mxu0
    %v743 = vpop.f32.mrb[0].mxu0
    %v744 = vpop.f32.mrb[0].mxu0
    %745 = vdwg.mxu0
    %v746 = vpack.c.bf16 %v741, %v741
    %v748 = vsel %vm154, %v746, 0
    %v751 = vsel %vm221, %v72, 0
    %753 = vmatprep.subr.bf16.mxu0 0
    %754 = vmatpush1.bf16.msra.mxu0 %v751
    %755 = vmatprep.subr.bf16.mxu0 0
    %756 = vmatpush1.bf16.msra.mxu0 0
    %757 = vmatprep.subr.bf16.mxu0 0
    %758 = vmatpush1.bf16.msra.mxu0 0
    %759 = vmatprep.subr.bf16.mxu0 0
    %760 = vmatpush1.bf16.msra.mxu0 0
    %761 = vmatprep.subr.bf16.mxu0 0
    %762 = vmatpush1.bf16.msra.mxu0 0
    %763 = vmatprep.subr.bf16.mxu0 0
    %764 = vmatpush1.bf16.msra.mxu0 0
    %765 = vmatprep.subr.bf16.mxu0 0
    %766 = vmatpush1.bf16.msra.mxu0 0
    %767 = vmatprep.subr.bf16.mxu0 0
    %768 = vmatpush1.bf16.msra.mxu0 0
    %769 = vmatprep.subr.bf16.mxu0 0
    %770 = vmatpush1.bf16.msra.mxu0 0
    %771 = vmatprep.subr.bf16.mxu0 0
    %772 = vmatpush1.bf16.msra.mxu0 0
    %773 = vmatprep.subr.bf16.mxu0 0
    %774 = vmatpush1.bf16.msra.mxu0 0
    %775 = vmatprep.subr.bf16.mxu0 0
    %776 = vmatpush1.bf16.msra.mxu0 0
    %777 = vmatprep.subr.bf16.mxu0 0
    %778 = vmatpush1.bf16.msra.mxu0 0
    %779 = vmatprep.subr.bf16.mxu0 0
    %780 = vmatpush1.bf16.msra.mxu0 0
    %781 = vmatprep.subr.bf16.mxu0 0
    %782 = vmatpush1.bf16.msra.mxu0 0
    %783 = vmatprep.subr.bf16.mxu0 0
    %784 = vmatpush1.bf16.msra.mxu0 0
    %785 = vmatprep.mubr.bf16.mxu0 0
    %786 = vmatmul.mubr.bf16.gmra.mrb[0].mxu0 %v748
    %v787 = vpop.f32.mrb[0].mxu0
    %v788 = vadd.f32 0.0, %v787
    %v789 = vpop.f32.mrb[0].mxu0
    %v790 = vpop.f32.mrb[0].mxu0
    %v791 = vpop.f32.mrb[0].mxu0
    %792 = vdwg.mxu0
    %v793 = vadd.f32 %v632, %v788
    %v795 = vlaneseq
    %v796 = vshrl.u32 %v795, 7
    %v797 = vsub.s32 0, %v796
    %v798 = vrot.slane %v73, %v797
    %v800 = vadd.f32 %v793, %v798
    %801 = vst.msk [vmem:[#allocation8] sm:$0xff] %vm100, %v800
    %v802 = vld [vmem:[#allocation2] sm:$0xff]
    %v803 = vpack.c.bf16 %v802, %v802
    %805 = vrot.lane.b32.xlu0 %v803, 96
    %v806 = vpop.permute.xlu0 %805
    %v808 = vsel %vm100, %v806, 0
    %810 = vmatprep.subr.bf16.mxu0 0
    %811 = vmatpush1.bf16.msra.mxu0 %v96
    %812 = vmatprep.subr.bf16.mxu0 0
    %813 = vmatpush1.bf16.msra.mxu0 %v97
    %814 = vmatprep.subr.bf16.mxu0 0
    %815 = vmatpush1.bf16.msra.mxu0 0
    %816 = vmatprep.subr.bf16.mxu0 0
    %817 = vmatpush1.bf16.msra.mxu0 0
    %818 = vmatprep.subr.bf16.mxu0 0
    %819 = vmatpush1.bf16.msra.mxu0 0
    %820 = vmatprep.subr.bf16.mxu0 0
    %821 = vmatpush1.bf16.msra.mxu0 0
    %822 = vmatprep.subr.bf16.mxu0 0
    %823 = vmatpush1.bf16.msra.mxu0 0
    %824 = vmatprep.subr.bf16.mxu0 0
    %825 = vmatpush1.bf16.msra.mxu0 0
    %826 = vmatprep.subr.bf16.mxu0 0
    %827 = vmatpush1.bf16.msra.mxu0 0
    %828 = vmatprep.subr.bf16.mxu0 0
    %829 = vmatpush1.bf16.msra.mxu0 0
    %830 = vmatprep.subr.bf16.mxu0 0
    %831 = vmatpush1.bf16.msra.mxu0 0
    %832 = vmatprep.subr.bf16.mxu0 0
    %833 = vmatpush1.bf16.msra.mxu0 0
    %834 = vmatprep.subr.bf16.mxu0 0
    %835 = vmatpush1.bf16.msra.mxu0 0
    %836 = vmatprep.subr.bf16.mxu0 0
    %837 = vmatpush1.bf16.msra.mxu0 0
    %838 = vmatprep.subr.bf16.mxu0 0
    %839 = vmatpush1.bf16.msra.mxu0 0
    %840 = vmatprep.subr.bf16.mxu0 0
    %841 = vmatpush1.bf16.msra.mxu0 0
    %842 = vmatprep.mubr.bf16.mxu0 0
    %843 = vmatmul.mubr.bf16.gmra.mrb[0].mxu0 %v808
    %v844 = vpop.f32.mrb[0].mxu0
    %v845 = vadd.f32 %v86, %v844
    %v846 = vpop.f32.mrb[0].mxu0
    %v847 = vpop.f32.mrb[0].mxu0
    %v848 = vpop.f32.mrb[0].mxu0
    %849 = vdwg.mxu0
    %s850 = scalar_lea.vmem %s5, 8
    %v851 = vld [vmem:[%s850] sm:$0xff]
    %v852 = vadd.f32 %v851, %v146
    %vm853 = vcmp.eq.f32.partialorder %v852, 0.0
    %vm854 = vmor %vm853, %vm78
    %v855 = vpack.c.bf16 %v845, %v845
    %857 = vrot.lane.b32.xlu0 %v855, 96
    %v858 = vpop.permute.xlu0 %857
    %v860 = vsel %vm154, %v855, 0
    %v863 = vsel %vm154, %v858, 0
    %865 = vmatprep.subr.bf16.mxu0 0
    %866 = vmatpush1.bf16.xpose.msra.mxu0 %v863
    %867 = vmatprep.subr.bf16.mxu0 0
    %868 = vmatpush1.bf16.xpose.msra.mxu0 0
    %869 = vmatprep.subr.bf16.mxu0 0
    %870 = vmatpush1.bf16.xpose.msra.mxu0 0
    %871 = vmatprep.subr.bf16.mxu0 0
    %872 = vmatpush1.bf16.xpose.msra.mxu0 0
    %873 = vmatprep.subr.bf16.mxu0 0
    %874 = vmatpush1.bf16.xpose.msra.mxu0 0
    %875 = vmatprep.subr.bf16.mxu0 0
    %876 = vmatpush1.bf16.xpose.msra.mxu0 0
    %877 = vmatprep.subr.bf16.mxu0 0
    %878 = vmatpush1.bf16.xpose.msra.mxu0 0
    %879 = vmatprep.subr.bf16.mxu0 0
    %880 = vmatpush1.bf16.xpose.msra.mxu0 0
    %881 = vmatprep.subr.bf16.mxu0 0
    %882 = vmatpush1.bf16.xpose.msra.mxu0 0
    %883 = vmatprep.subr.bf16.mxu0 0
    %884 = vmatpush1.bf16.xpose.msra.mxu0 0
    %885 = vmatprep.subr.bf16.mxu0 0
    %886 = vmatpush1.bf16.xpose.msra.mxu0 0
    %887 = vmatprep.subr.bf16.mxu0 0
    %888 = vmatpush1.bf16.xpose.msra.mxu0 0
    %889 = vmatprep.subr.bf16.mxu0 0
    %890 = vmatpush1.bf16.xpose.msra.mxu0 0
    %891 = vmatprep.subr.bf16.mxu0 0
    %892 = vmatpush1.bf16.xpose.msra.mxu0 0
    %893 = vmatprep.subr.bf16.mxu0 0
    %894 = vmatpush1.bf16.xpose.msra.mxu0 0
    %895 = vmatprep.subr.bf16.mxu0 0
    %896 = vmatpush1.bf16.xpose.msra.mxu0 0
    %897 = vmatprep.mubr.bf16.mxu0 0
    %898 = vmatmul.mubr.bf16.gmra.mrb[0].mxu0 %v860
    %v899 = vpop.f32.mrb[0].mxu0
    %v900 = vadd.f32 0.0, %v899
    %v901 = vpop.f32.mrb[0].mxu0
    %v902 = vpop.f32.mrb[0].mxu0
    %v903 = vpop.f32.mrb[0].mxu0
    %904 = vdwg.mxu0
    %v905 = vmul.f32 %v900, 0.35355338
    %v906 = vsel %vm854, -1e+30, %v905
    %v907 = vsel %vm154, %v906, -inf
    %908 = vmax.xlane.f32.xlu0 %v907
    %v909 = vpop.xlane.xlu0 %908
    %v910 = vsub.f32 %v906, %v909
    %v911 = vmul.f32 %v910, 1.442695
    %v912 = vpow.pop %v911
    %v913 = vsel %vm154, %v912, 0.0
    %914 = vadd.xlane.f32.xlu0 %v913
    %v915 = vpop.xlane.xlu0 %914
    %v916 = vrcp.pop %v915
    %v917 = vmul.f32 %v912, %v916
    %v918 = vmul.f32 %v917, %v852
    %v919 = vpack.c.bf16 %v918, %v918
    %920 = vrot.lane.b32.xlu0 %v855, 64
    %v921 = vpop.permute.xlu0 %920
    %v923 = vsel %vm154, %v919, 0
    %v926 = vsel %vm221, %v921, 0
    %928 = vmatprep.subr.bf16.mxu0 0
    %929 = vmatpush1.bf16.msra.mxu0 %v926
    %930 = vmatprep.subr.bf16.mxu0 0
    %931 = vmatpush1.bf16.msra.mxu0 0
    %932 = vmatprep.subr.bf16.mxu0 0
    %933 = vmatpush1.bf16.msra.mxu0 0
    %934 = vmatprep.subr.bf16.mxu0 0
    %935 = vmatpush1.bf16.msra.mxu0 0
    %936 = vmatprep.subr.bf16.mxu0 0
    %937 = vmatpush1.bf16.msra.mxu0 0
    %938 = vmatprep.subr.bf16.mxu0 0
    %939 = vmatpush1.bf16.msra.mxu0 0
    %940 = vmatprep.subr.bf16.mxu0 0
    %941 = vmatpush1.bf16.msra.mxu0 0
    %942 = vmatprep.subr.bf16.mxu0 0
    %943 = vmatpush1.bf16.msra.mxu0 0
    %944 = vmatprep.subr.bf16.mxu0 0
    %945 = vmatpush1.bf16.msra.mxu0 0
    %946 = vmatprep.subr.bf16.mxu0 0
    %947 = vmatpush1.bf16.msra.mxu0 0
    %948 = vmatprep.subr.bf16.mxu0 0
    %949 = vmatpush1.bf16.msra.mxu0 0
    %950 = vmatprep.subr.bf16.mxu0 0
    %951 = vmatpush1.bf16.msra.mxu0 0
    %952 = vmatprep.subr.bf16.mxu0 0
    %953 = vmatpush1.bf16.msra.mxu0 0
    %954 = vmatprep.subr.bf16.mxu0 0
    %955 = vmatpush1.bf16.msra.mxu0 0
    %956 = vmatprep.subr.bf16.mxu0 0
    %957 = vmatpush1.bf16.msra.mxu0 0
    %958 = vmatprep.subr.bf16.mxu0 0
    %959 = vmatpush1.bf16.msra.mxu0 0
    %960 = vmatprep.mubr.bf16.mxu0 0
    %961 = vmatmul.mubr.bf16.gmra.mrb[0].mxu0 %v923
    %v962 = vpop.f32.mrb[0].mxu0
    %v963 = vadd.f32 0.0, %v962
    %v964 = vpop.f32.mrb[0].mxu0
    %v965 = vpop.f32.mrb[0].mxu0
    %v966 = vpop.f32.mrb[0].mxu0
    %967 = vdwg.mxu0
    %v968 = vpack.c.bf16 %v963, %v963
    %969 = vrot.lane.b32.xlu0 %v855, 120
    %v970 = vpop.permute.xlu0 %969
    %971 = vrot.lane.b32.xlu0 %v855, 88
    %v972 = vpop.permute.xlu0 %971
    %v974 = vsel %vm154, %v970, 0
    %v977 = vsel %vm154, %v972, 0
    %979 = vmatprep.subr.bf16.mxu0 0
    %980 = vmatpush1.bf16.xpose.msra.mxu0 %v977
    %981 = vmatprep.subr.bf16.mxu0 0
    %982 = vmatpush1.bf16.xpose.msra.mxu0 0
    %983 = vmatprep.subr.bf16.mxu0 0
    %984 = vmatpush1.bf16.xpose.msra.mxu0 0
    %985 = vmatprep.subr.bf16.mxu0 0
    %986 = vmatpush1.bf16.xpose.msra.mxu0 0
    %987 = vmatprep.subr.bf16.mxu0 0
    %988 = vmatpush1.bf16.xpose.msra.mxu0 0
    %989 = vmatprep.subr.bf16.mxu0 0
    %990 = vmatpush1.bf16.xpose.msra.mxu0 0
    %991 = vmatprep.subr.bf16.mxu0 0
    %992 = vmatpush1.bf16.xpose.msra.mxu0 0
    %993 = vmatprep.subr.bf16.mxu0 0
    %994 = vmatpush1.bf16.xpose.msra.mxu0 0
    %995 = vmatprep.subr.bf16.mxu0 0
    %996 = vmatpush1.bf16.xpose.msra.mxu0 0
    %997 = vmatprep.subr.bf16.mxu0 0
    %998 = vmatpush1.bf16.xpose.msra.mxu0 0
    %999 = vmatprep.subr.bf16.mxu0 0
    %1000 = vmatpush1.bf16.xpose.msra.mxu0 0
    %1001 = vmatprep.subr.bf16.mxu0 0
    %1002 = vmatpush1.bf16.xpose.msra.mxu0 0
    %1003 = vmatprep.subr.bf16.mxu0 0
    %1004 = vmatpush1.bf16.xpose.msra.mxu0 0
    %1005 = vmatprep.subr.bf16.mxu0 0
    %1006 = vmatpush1.bf16.xpose.msra.mxu0 0
    %1007 = vmatprep.subr.bf16.mxu0 0
    %1008 = vmatpush1.bf16.xpose.msra.mxu0 0
    %1009 = vmatprep.subr.bf16.mxu0 0
    %1010 = vmatpush1.bf16.xpose.msra.mxu0 0
    %1011 = vmatprep.mubr.bf16.mxu0 0
    %1012 = vmatmul.mubr.bf16.gmra.mrb[0].mxu0 %v974
    %v1013 = vpop.f32.mrb[0].mxu0
    %v1014 = vadd.f32 0.0, %v1013
    %v1015 = vpop.f32.mrb[0].mxu0
    %v1016 = vpop.f32.mrb[0].mxu0
    %v1017 = vpop.f32.mrb[0].mxu0
    %1018 = vdwg.mxu0
    %v1019 = vmul.f32 %v1014, 0.35355338
    %v1020 = vsel %vm854, -1e+30, %v1019
    %v1021 = vsel %vm154, %v1020, -inf
    %1022 = vmax.xlane.f32.xlu0 %v1021
    %v1023 = vpop.xlane.xlu0 %1022
    %v1024 = vsub.f32 %v1020, %v1023
    %v1025 = vmul.f32 %v1024, 1.442695
    %v1026 = vpow.pop %v1025
    %v1027 = vsel %vm154, %v1026, 0.0
    %1028 = vadd.xlane.f32.xlu0 %v1027
    %v1029 = vpop.xlane.xlu0 %1028
    %v1030 = vrcp.pop %v1029
    %v1031 = vmul.f32 %v1026, %v1030
    %v1032 = vmul.f32 %v1031, %v852
    %v1033 = vpack.c.bf16 %v1032, %v1032
    %1034 = vrot.lane.b32.xlu0 %v855, 56
    %v1035 = vpop.permute.xlu0 %1034
    %v1037 = vsel %vm154, %v1033, 0
    %v1040 = vsel %vm221, %v1035, 0
    %1042 = vmatprep.subr.bf16.mxu0 0
    %1043 = vmatpush1.bf16.msra.mxu0 %v1040
    %1044 = vmatprep.subr.bf16.mxu0 0
    %1045 = vmatpush1.bf16.msra.mxu0 0
    %1046 = vmatprep.subr.bf16.mxu0 0
    %1047 = vmatpush1.bf16.msra.mxu0 0
    %1048 = vmatprep.subr.bf16.mxu0 0
    %1049 = vmatpush1.bf16.msra.mxu0 0
    %1050 = vmatprep.subr.bf16.mxu0 0
    %1051 = vmatpush1.bf16.msra.mxu0 0
    %1052 = vmatprep.subr.bf16.mxu0 0
    %1053 = vmatpush1.bf16.msra.mxu0 0
    %1054 = vmatprep.subr.bf16.mxu0 0
    %1055 = vmatpush1.bf16.msra.mxu0 0
    %1056 = vmatprep.subr.bf16.mxu0 0
    %1057 = vmatpush1.bf16.msra.mxu0 0
    %1058 = vmatprep.subr.bf16.mxu0 0
    %1059 = vmatpush1.bf16.msra.mxu0 0
    %1060 = vmatprep.subr.bf16.mxu0 0
    %1061 = vmatpush1.bf16.msra.mxu0 0
    %1062 = vmatprep.subr.bf16.mxu0 0
    %1063 = vmatpush1.bf16.msra.mxu0 0
    %1064 = vmatprep.subr.bf16.mxu0 0
    %1065 = vmatpush1.bf16.msra.mxu0 0
    %1066 = vmatprep.subr.bf16.mxu0 0
    %1067 = vmatpush1.bf16.msra.mxu0 0
    %1068 = vmatprep.subr.bf16.mxu0 0
    %1069 = vmatpush1.bf16.msra.mxu0 0
    %1070 = vmatprep.subr.bf16.mxu0 0
    %1071 = vmatpush1.bf16.msra.mxu0 0
    %1072 = vmatprep.subr.bf16.mxu0 0
    %1073 = vmatpush1.bf16.msra.mxu0 0
    %1074 = vmatprep.mubr.bf16.mxu0 0
    %1075 = vmatmul.mubr.bf16.gmra.mrb[0].mxu0 %v1037
    %v1076 = vpop.f32.mrb[0].mxu0
    %v1077 = vadd.f32 0.0, %v1076
    %v1078 = vpop.f32.mrb[0].mxu0
    %v1079 = vpop.f32.mrb[0].mxu0
    %v1080 = vpop.f32.mrb[0].mxu0
    %1081 = vdwg.mxu0
    %v1082 = vpack.c.bf16 %v1077, %v1077
    %v1084 = vsel %vm154, %v1082, 0
    %1086 = vmatprep.subr.bf16.mxu0 0
    %1087 = vmatpush1.bf16.msra.mxu0 %v384
    %1088 = vmatprep.subr.bf16.mxu0 0
    %1089 = vmatpush1.bf16.msra.mxu0 0
    %1090 = vmatprep.subr.bf16.mxu0 0
    %1091 = vmatpush1.bf16.msra.mxu0 0
    %1092 = vmatprep.subr.bf16.mxu0 0
    %1093 = vmatpush1.bf16.msra.mxu0 0
    %1094 = vmatprep.subr.bf16.mxu0 0
    %1095 = vmatpush1.bf16.msra.mxu0 0
    %1096 = vmatprep.subr.bf16.mxu0 0
    %1097 = vmatpush1.bf16.msra.mxu0 0
    %1098 = vmatprep.subr.bf16.mxu0 0
    %1099 = vmatpush1.bf16.msra.mxu0 0
    %1100 = vmatprep.subr.bf16.mxu0 0
    %1101 = vmatpush1.bf16.msra.mxu0 0
    %1102 = vmatprep.subr.bf16.mxu0 0
    %1103 = vmatpush1.bf16.msra.mxu0 0
    %1104 = vmatprep.subr.bf16.mxu0 0
    %1105 = vmatpush1.bf16.msra.mxu0 0
    %1106 = vmatprep.subr.bf16.mxu0 0
    %1107 = vmatpush1.bf16.msra.mxu0 0
    %1108 = vmatprep.subr.bf16.mxu0 0
    %1109 = vmatpush1.bf16.msra.mxu0 0
    %1110 = vmatprep.subr.bf16.mxu0 0
    %1111 = vmatpush1.bf16.msra.mxu0 0
    %1112 = vmatprep.subr.bf16.mxu0 0
    %1113 = vmatpush1.bf16.msra.mxu0 0
    %1114 = vmatprep.subr.bf16.mxu0 0
    %1115 = vmatpush1.bf16.msra.mxu0 0
    %1116 = vmatprep.subr.bf16.mxu0 0
    %1117 = vmatpush1.bf16.msra.mxu0 0
    %1118 = vmatprep.mubr.bf16.mxu0 0
    %1119 = vmatmul.mubr.bf16.gmra.mrb[0].mxu0 %v1084
    %v1120 = vpop.f32.mrb[0].mxu0
    %v1121 = vadd.f32 0.0, %v1120
    %v1122 = vpop.f32.mrb[0].mxu0
    %v1123 = vpop.f32.mrb[0].mxu0
    %v1124 = vpop.f32.mrb[0].mxu0
    %1125 = vdwg.mxu0
    %v1127 = vsel %vm154, %v968, 0
    %1129 = vmatprep.subr.bf16.mxu0 0
    %1130 = vmatpush1.bf16.msra.mxu0 %v430
    %1131 = vmatprep.subr.bf16.mxu0 0
    %1132 = vmatpush1.bf16.msra.mxu0 0
    %1133 = vmatprep.subr.bf16.mxu0 0
    %1134 = vmatpush1.bf16.msra.mxu0 0
    %1135 = vmatprep.subr.bf16.mxu0 0
    %1136 = vmatpush1.bf16.msra.mxu0 0
    %1137 = vmatprep.subr.bf16.mxu0 0
    %1138 = vmatpush1.bf16.msra.mxu0 0
    %1139 = vmatprep.subr.bf16.mxu0 0
    %1140 = vmatpush1.bf16.msra.mxu0 0
    %1141 = vmatprep.subr.bf16.mxu0 0
    %1142 = vmatpush1.bf16.msra.mxu0 0
    %1143 = vmatprep.subr.bf16.mxu0 0
    %1144 = vmatpush1.bf16.msra.mxu0 0
    %1145 = vmatprep.subr.bf16.mxu0 0
    %1146 = vmatpush1.bf16.msra.mxu0 0
    %1147 = vmatprep.subr.bf16.mxu0 0
    %1148 = vmatpush1.bf16.msra.mxu0 0
    %1149 = vmatprep.subr.bf16.mxu0 0
    %1150 = vmatpush1.bf16.msra.mxu0 0
    %1151 = vmatprep.subr.bf16.mxu0 0
    %1152 = vmatpush1.bf16.msra.mxu0 0
    %1153 = vmatprep.subr.bf16.mxu0 0
    %1154 = vmatpush1.bf16.msra.mxu0 0
    %1155 = vmatprep.subr.bf16.mxu0 0
    %1156 = vmatpush1.bf16.msra.mxu0 0
    %1157 = vmatprep.subr.bf16.mxu0 0
    %1158 = vmatpush1.bf16.msra.mxu0 0
    %1159 = vmatprep.subr.bf16.mxu0 0
    %1160 = vmatpush1.bf16.msra.mxu0 0
    %1161 = vmatprep.mubr.bf16.mxu0 0
    %1162 = vmatmul.mubr.bf16.gmra.mrb[0].mxu0 %v1127
    %v1163 = vpop.f32.mrb[0].mxu0
    %v1164 = vadd.f32 %v1121, %v1163
    %v1165 = vpop.f32.mrb[0].mxu0
    %v1166 = vpop.f32.mrb[0].mxu0
    %v1167 = vpop.f32.mrb[0].mxu0
    %1168 = vdwg.mxu0
    %1169 = vrot.lane.b32.xlu0 %v855, 112
    %v1170 = vpop.permute.xlu0 %1169
    %1171 = vrot.lane.b32.xlu0 %v855, 80
    %v1172 = vpop.permute.xlu0 %1171
    %v1174 = vsel %vm154, %v1170, 0
    %v1177 = vsel %vm154, %v1172, 0
    %1179 = vmatprep.subr.bf16.mxu0 0
    %1180 = vmatpush1.bf16.xpose.msra.mxu0 %v1177
    %1181 = vmatprep.subr.bf16.mxu0 0
    %1182 = vmatpush1.bf16.xpose.msra.mxu0 0
    %1183 = vmatprep.subr.bf16.mxu0 0
    %1184 = vmatpush1.bf16.xpose.msra.mxu0 0
    %1185 = vmatprep.subr.bf16.mxu0 0
    %1186 = vmatpush1.bf16.xpose.msra.mxu0 0
    %1187 = vmatprep.subr.bf16.mxu0 0
    %1188 = vmatpush1.bf16.xpose.msra.mxu0 0
    %1189 = vmatprep.subr.bf16.mxu0 0
    %1190 = vmatpush1.bf16.xpose.msra.mxu0 0
    %1191 = vmatprep.subr.bf16.mxu0 0
    %1192 = vmatpush1.bf16.xpose.msra.mxu0 0
    %1193 = vmatprep.subr.bf16.mxu0 0
    %1194 = vmatpush1.bf16.xpose.msra.mxu0 0
    %1195 = vmatprep.subr.bf16.mxu0 0
    %1196 = vmatpush1.bf16.xpose.msra.mxu0 0
    %1197 = vmatprep.subr.bf16.mxu0 0
    %1198 = vmatpush1.bf16.xpose.msra.mxu0 0
    %1199 = vmatprep.subr.bf16.mxu0 0
    %1200 = vmatpush1.bf16.xpose.msra.mxu0 0
    %1201 = vmatprep.subr.bf16.mxu0 0
    %1202 = vmatpush1.bf16.xpose.msra.mxu0 0
    %1203 = vmatprep.subr.bf16.mxu0 0
    %1204 = vmatpush1.bf16.xpose.msra.mxu0 0
    %1205 = vmatprep.subr.bf16.mxu0 0
    %1206 = vmatpush1.bf16.xpose.msra.mxu0 0
    %1207 = vmatprep.subr.bf16.mxu0 0
    %1208 = vmatpush1.bf16.xpose.msra.mxu0 0
    %1209 = vmatprep.subr.bf16.mxu0 0
    %1210 = vmatpush1.bf16.xpose.msra.mxu0 0
    %1211 = vmatprep.mubr.bf16.mxu0 0
    %1212 = vmatmul.mubr.bf16.gmra.mrb[0].mxu0 %v1174
    %v1213 = vpop.f32.mrb[0].mxu0
    %v1214 = vadd.f32 0.0, %v1213
    %v1215 = vpop.f32.mrb[0].mxu0
    %v1216 = vpop.f32.mrb[0].mxu0
    %v1217 = vpop.f32.mrb[0].mxu0
    %1218 = vdwg.mxu0
    %v1219 = vmul.f32 %v1214, 0.35355338
    %v1220 = vsel %vm854, -1e+30, %v1219
    %v1221 = vsel %vm154, %v1220, -inf
    %1222 = vmax.xlane.f32.xlu0 %v1221
    %v1223 = vpop.xlane.xlu0 %1222
    %v1224 = vsub.f32 %v1220, %v1223
    %v1225 = vmul.f32 %v1224, 1.442695
    %v1226 = vpow.pop %v1225
    %v1227 = vsel %vm154, %v1226, 0.0
    %1228 = vadd.xlane.f32.xlu0 %v1227
    %v1229 = vpop.xlane.xlu0 %1228
    %v1230 = vrcp.pop %v1229
    %v1231 = vmul.f32 %v1226, %v1230
    %v1232 = vmul.f32 %v1231, %v852
    %v1233 = vpack.c.bf16 %v1232, %v1232
    %1234 = vrot.lane.b32.xlu0 %v855, 48
    %v1235 = vpop.permute.xlu0 %1234
    %v1237 = vsel %vm154, %v1233, 0
    %v1240 = vsel %vm221, %v1235, 0
    %1242 = vmatprep.subr.bf16.mxu0 0
    %1243 = vmatpush1.bf16.msra.mxu0 %v1240
    %1244 = vmatprep.subr.bf16.mxu0 0
    %1245 = vmatpush1.bf16.msra.mxu0 0
    %1246 = vmatprep.subr.bf16.mxu0 0
    %1247 = vmatpush1.bf16.msra.mxu0 0
    %1248 = vmatprep.subr.bf16.mxu0 0
    %1249 = vmatpush1.bf16.msra.mxu0 0
    %1250 = vmatprep.subr.bf16.mxu0 0
    %1251 = vmatpush1.bf16.msra.mxu0 0
    %1252 = vmatprep.subr.bf16.mxu0 0
    %1253 = vmatpush1.bf16.msra.mxu0 0
    %1254 = vmatprep.subr.bf16.mxu0 0
    %1255 = vmatpush1.bf16.msra.mxu0 0
    %1256 = vmatprep.subr.bf16.mxu0 0
    %1257 = vmatpush1.bf16.msra.mxu0 0
    %1258 = vmatprep.subr.bf16.mxu0 0
    %1259 = vmatpush1.bf16.msra.mxu0 0
    %1260 = vmatprep.subr.bf16.mxu0 0
    %1261 = vmatpush1.bf16.msra.mxu0 0
    %1262 = vmatprep.subr.bf16.mxu0 0
    %1263 = vmatpush1.bf16.msra.mxu0 0
    %1264 = vmatprep.subr.bf16.mxu0 0
    %1265 = vmatpush1.bf16.msra.mxu0 0
    %1266 = vmatprep.subr.bf16.mxu0 0
    %1267 = vmatpush1.bf16.msra.mxu0 0
    %1268 = vmatprep.subr.bf16.mxu0 0
    %1269 = vmatpush1.bf16.msra.mxu0 0
    %1270 = vmatprep.subr.bf16.mxu0 0
    %1271 = vmatpush1.bf16.msra.mxu0 0
    %1272 = vmatprep.subr.bf16.mxu0 0
    %1273 = vmatpush1.bf16.msra.mxu0 0
    %1274 = vmatprep.mubr.bf16.mxu0 0
    %1275 = vmatmul.mubr.bf16.gmra.mrb[0].mxu0 %v1237
    %v1276 = vpop.f32.mrb[0].mxu0
    %v1277 = vadd.f32 0.0, %v1276
    %v1278 = vpop.f32.mrb[0].mxu0
    %v1279 = vpop.f32.mrb[0].mxu0
    %v1280 = vpop.f32.mrb[0].mxu0
    %1281 = vdwg.mxu0
    %v1282 = vpack.c.bf16 %v1277, %v1277
    %v1284 = vsel %vm154, %v1282, 0
    %1286 = vmatprep.subr.bf16.mxu0 0
    %1287 = vmatpush1.bf16.msra.mxu0 %v590
    %1288 = vmatprep.subr.bf16.mxu0 0
    %1289 = vmatpush1.bf16.msra.mxu0 0
    %1290 = vmatprep.subr.bf16.mxu0 0
    %1291 = vmatpush1.bf16.msra.mxu0 0
    %1292 = vmatprep.subr.bf16.mxu0 0
    %1293 = vmatpush1.bf16.msra.mxu0 0
    %1294 = vmatprep.subr.bf16.mxu0 0
    %1295 = vmatpush1.bf16.msra.mxu0 0
    %1296 = vmatprep.subr.bf16.mxu0 0
    %1297 = vmatpush1.bf16.msra.mxu0 0
    %1298 = vmatprep.subr.bf16.mxu0 0
    %1299 = vmatpush1.bf16.msra.mxu0 0
    %1300 = vmatprep.subr.bf16.mxu0 0
    %1301 = vmatpush1.bf16.msra.mxu0 0
    %1302 = vmatprep.subr.bf16.mxu0 0
    %1303 = vmatpush1.bf16.msra.mxu0 0
    %1304 = vmatprep.subr.bf16.mxu0 0
    %1305 = vmatpush1.bf16.msra.mxu0 0
    %1306 = vmatprep.subr.bf16.mxu0 0
    %1307 = vmatpush1.bf16.msra.mxu0 0
    %1308 = vmatprep.subr.bf16.mxu0 0
    %1309 = vmatpush1.bf16.msra.mxu0 0
    %1310 = vmatprep.subr.bf16.mxu0 0
    %1311 = vmatpush1.bf16.msra.mxu0 0
    %1312 = vmatprep.subr.bf16.mxu0 0
    %1313 = vmatpush1.bf16.msra.mxu0 0
    %1314 = vmatprep.subr.bf16.mxu0 0
    %1315 = vmatpush1.bf16.msra.mxu0 0
    %1316 = vmatprep.subr.bf16.mxu0 0
    %1317 = vmatpush1.bf16.msra.mxu0 0
    %1318 = vmatprep.mubr.bf16.mxu0 0
    %1319 = vmatmul.mubr.bf16.gmra.mrb[0].mxu0 %v1284
    %v1320 = vpop.f32.mrb[0].mxu0
    %v1321 = vadd.f32 0.0, %v1320
    %v1322 = vpop.f32.mrb[0].mxu0
    %v1323 = vpop.f32.mrb[0].mxu0
    %v1324 = vpop.f32.mrb[0].mxu0
    %1325 = vdwg.mxu0
    %v1326 = vadd.f32 %v1164, %v1321
    %1327 = vrot.lane.b32.xlu0 %v855, 104
    %v1328 = vpop.permute.xlu0 %1327
    %1329 = vrot.lane.b32.xlu0 %v855, 72
    %v1330 = vpop.permute.xlu0 %1329
    %v1332 = vsel %vm154, %v1328, 0
    %v1335 = vsel %vm154, %v1330, 0
    %1337 = vmatprep.subr.bf16.mxu0 0
    %1338 = vmatpush1.bf16.xpose.msra.mxu0 %v1335
    %1339 = vmatprep.subr.bf16.mxu0 0
    %1340 = vmatpush1.bf16.xpose.msra.mxu0 0
    %1341 = vmatprep.subr.bf16.mxu0 0
    %1342 = vmatpush1.bf16.xpose.msra.mxu0 0
    %1343 = vmatprep.subr.bf16.mxu0 0
    %1344 = vmatpush1.bf16.xpose.msra.mxu0 0
    %1345 = vmatprep.subr.bf16.mxu0 0
    %1346 = vmatpush1.bf16.xpose.msra.mxu0 0
    %1347 = vmatprep.subr.bf16.mxu0 0
    %1348 = vmatpush1.bf16.xpose.msra.mxu0 0
    %1349 = vmatprep.subr.bf16.mxu0 0
    %1350 = vmatpush1.bf16.xpose.msra.mxu0 0
    %1351 = vmatprep.subr.bf16.mxu0 0
    %1352 = vmatpush1.bf16.xpose.msra.mxu0 0
    %1353 = vmatprep.subr.bf16.mxu0 0
    %1354 = vmatpush1.bf16.xpose.msra.mxu0 0
    %1355 = vmatprep.subr.bf16.mxu0 0
    %1356 = vmatpush1.bf16.xpose.msra.mxu0 0
    %1357 = vmatprep.subr.bf16.mxu0 0
    %1358 = vmatpush1.bf16.xpose.msra.mxu0 0
    %1359 = vmatprep.subr.bf16.mxu0 0
    %1360 = vmatpush1.bf16.xpose.msra.mxu0 0
    %1361 = vmatprep.subr.bf16.mxu0 0
    %1362 = vmatpush1.bf16.xpose.msra.mxu0 0
    %1363 = vmatprep.subr.bf16.mxu0 0
    %1364 = vmatpush1.bf16.xpose.msra.mxu0 0
    %1365 = vmatprep.subr.bf16.mxu0 0
    %1366 = vmatpush1.bf16.xpose.msra.mxu0 0
    %1367 = vmatprep.subr.bf16.mxu0 0
    %1368 = vmatpush1.bf16.xpose.msra.mxu0 0
    %1369 = vmatprep.mubr.bf16.mxu0 0
    %1370 = vmatmul.mubr.bf16.gmra.mrb[0].mxu0 %v1332
    %v1371 = vpop.f32.mrb[0].mxu0
    %v1372 = vadd.f32 0.0, %v1371
    %v1373 = vpop.f32.mrb[0].mxu0
    %v1374 = vpop.f32.mrb[0].mxu0
    %v1375 = vpop.f32.mrb[0].mxu0
    %1376 = vdwg.mxu0
    %v1377 = vmul.f32 %v1372, 0.35355338
    %v1378 = vsel %vm854, -1e+30, %v1377
    %v1379 = vsel %vm154, %v1378, -inf
    %1380 = vmax.xlane.f32.xlu0 %v1379
    %v1381 = vpop.xlane.xlu0 %1380
    %v1382 = vsub.f32 %v1378, %v1381
    %v1383 = vmul.f32 %v1382, 1.442695
    %v1384 = vpow.pop %v1383
    %v1385 = vsel %vm154, %v1384, 0.0
    %1386 = vadd.xlane.f32.xlu0 %v1385
    %v1387 = vpop.xlane.xlu0 %1386
    %v1388 = vrcp.pop %v1387
    %v1389 = vmul.f32 %v1384, %v1388
    %v1390 = vmul.f32 %v1389, %v852
    %v1391 = vpack.c.bf16 %v1390, %v1390
    %1392 = vrot.lane.b32.xlu0 %v855, 40
    %v1393 = vpop.permute.xlu0 %1392
    %v1395 = vsel %vm154, %v1391, 0
    %v1398 = vsel %vm221, %v1393, 0
    %1400 = vmatprep.subr.bf16.mxu0 0
    %1401 = vmatpush1.bf16.msra.mxu0 %v1398
    %1402 = vmatprep.subr.bf16.mxu0 0
    %1403 = vmatpush1.bf16.msra.mxu0 0
    %1404 = vmatprep.subr.bf16.mxu0 0
    %1405 = vmatpush1.bf16.msra.mxu0 0
    %1406 = vmatprep.subr.bf16.mxu0 0
    %1407 = vmatpush1.bf16.msra.mxu0 0
    %1408 = vmatprep.subr.bf16.mxu0 0
    %1409 = vmatpush1.bf16.msra.mxu0 0
    %1410 = vmatprep.subr.bf16.mxu0 0
    %1411 = vmatpush1.bf16.msra.mxu0 0
    %1412 = vmatprep.subr.bf16.mxu0 0
    %1413 = vmatpush1.bf16.msra.mxu0 0
    %1414 = vmatprep.subr.bf16.mxu0 0
    %1415 = vmatpush1.bf16.msra.mxu0 0
    %1416 = vmatprep.subr.bf16.mxu0 0
    %1417 = vmatpush1.bf16.msra.mxu0 0
    %1418 = vmatprep.subr.bf16.mxu0 0
    %1419 = vmatpush1.bf16.msra.mxu0 0
    %1420 = vmatprep.subr.bf16.mxu0 0
    %1421 = vmatpush1.bf16.msra.mxu0 0
    %1422 = vmatprep.subr.bf16.mxu0 0
    %1423 = vmatpush1.bf16.msra.mxu0 0
    %1424 = vmatprep.subr.bf16.mxu0 0
    %1425 = vmatpush1.bf16.msra.mxu0 0
    %1426 = vmatprep.subr.bf16.mxu0 0
    %1427 = vmatpush1.bf16.msra.mxu0 0
    %1428 = vmatprep.subr.bf16.mxu0 0
    %1429 = vmatpush1.bf16.msra.mxu0 0
    %1430 = vmatprep.subr.bf16.mxu0 0
    %1431 = vmatpush1.bf16.msra.mxu0 0
    %1432 = vmatprep.mubr.bf16.mxu0 0
    %1433 = vmatmul.mubr.bf16.gmra.mrb[0].mxu0 %v1395
    %v1434 = vpop.f32.mrb[0].mxu0
    %v1435 = vadd.f32 0.0, %v1434
    %v1436 = vpop.f32.mrb[0].mxu0
    %v1437 = vpop.f32.mrb[0].mxu0
    %v1438 = vpop.f32.mrb[0].mxu0
    %1439 = vdwg.mxu0
    %v1440 = vpack.c.bf16 %v1435, %v1435
    %v1442 = vsel %vm154, %v1440, 0
    %1444 = vmatprep.subr.bf16.mxu0 0
    %1445 = vmatpush1.bf16.msra.mxu0 %v751
    %1446 = vmatprep.subr.bf16.mxu0 0
    %1447 = vmatpush1.bf16.msra.mxu0 0
    %1448 = vmatprep.subr.bf16.mxu0 0
    %1449 = vmatpush1.bf16.msra.mxu0 0
    %1450 = vmatprep.subr.bf16.mxu0 0
    %1451 = vmatpush1.bf16.msra.mxu0 0
    %1452 = vmatprep.subr.bf16.mxu0 0
    %1453 = vmatpush1.bf16.msra.mxu0 0
    %1454 = vmatprep.subr.bf16.mxu0 0
    %1455 = vmatpush1.bf16.msra.mxu0 0
    %1456 = vmatprep.subr.bf16.mxu0 0
    %1457 = vmatpush1.bf16.msra.mxu0 0
    %1458 = vmatprep.subr.bf16.mxu0 0
    %1459 = vmatpush1.bf16.msra.mxu0 0
    %1460 = vmatprep.subr.bf16.mxu0 0
    %1461 = vmatpush1.bf16.msra.mxu0 0
    %1462 = vmatprep.subr.bf16.mxu0 0
    %1463 = vmatpush1.bf16.msra.mxu0 0
    %1464 = vmatprep.subr.bf16.mxu0 0
    %1465 = vmatpush1.bf16.msra.mxu0 0
    %1466 = vmatprep.subr.bf16.mxu0 0
    %1467 = vmatpush1.bf16.msra.mxu0 0
    %1468 = vmatprep.subr.bf16.mxu0 0
    %1469 = vmatpush1.bf16.msra.mxu0 0
    %1470 = vmatprep.subr.bf16.mxu0 0
    %1471 = vmatpush1.bf16.msra.mxu0 0
    %1472 = vmatprep.subr.bf16.mxu0 0
    %1473 = vmatpush1.bf16.msra.mxu0 0
    %1474 = vmatprep.subr.bf16.mxu0 0
    %1475 = vmatpush1.bf16.msra.mxu0 0
    %1476 = vmatprep.mubr.bf16.mxu0 0
    %1477 = vmatmul.mubr.bf16.gmra.mrb[0].mxu0 %v1442
    %v1478 = vpop.f32.mrb[0].mxu0
    %v1479 = vadd.f32 0.0, %v1478
    %v1480 = vpop.f32.mrb[0].mxu0
    %v1481 = vpop.f32.mrb[0].mxu0
    %v1482 = vpop.f32.mrb[0].mxu0
    %1483 = vdwg.mxu0
    %v1484 = vadd.f32 %v1326, %v1479
    %v1485 = vadd.f32 %v1484, %v798
    %1487 = vrot.lane.b32.xlu0 %v1485, 32
    %v1488 = vpop.permute.xlu0 %1487
    %vm1490 = vcmask 523520
    %1491 = vst.msk [vmem:[#allocation8] sm:$0xff] %vm1490, %v1488
    // Predicated region
    $region38: #{tpu_custom_call.1} parent=1 // pred_check
      _
    $region39: #{tpu_custom_call.1} parent=1 // pred_check_branch
      %1493 = sbr.rel (0) target = $region41
    $region40: #{tpu_custom_call.1} parent=1 // pred_region
      %s1495 = ssub.s32 128, 128
      %1496 = vsyncadd [#allocation4], %s1495
      %s1498 = sshll.u32 [#allocation8], 4
      %s1499 = int_to_ptr.vmem [resolvable:$true] %s1498
      %1501 = dma.vmem_to_hbm [thread:$0]  %s1499, 128, %s6, [#allocation4]
    $region41: #{tpu_custom_call.1} parent=1 // pred_fallthru
      _
    // Predicated region
    $region42: #{tpu_custom_call.1} parent=1 // pred_check
      _
    $region43: #{tpu_custom_call.1} parent=1 // pred_check_branch
      %1503 = sbr.rel (0) target = $region45
    $region44: #{tpu_custom_call.1} parent=1 // pred_region
      %1504 = dma.done [#allocation4], 128
    $region45: #{tpu_custom_call.1} parent=1 // pred_fallthru
      _
    %1505 = vsyncpa [#allocation3], 1
    %1506 = vsyncpa [#allocation6], 1
    %1507 = vsyncpa [#allocation4], 1

</llo_original>
